<compile_context>
chip_gen: v5e
topology: v5e:2x2
jax: 0.10.0
libtpu: 0.0.40
codegen_flags: <defaults>
</compile_context>

<pallas_src>
import functools

import jax
import jax.numpy as jnp
from jax import lax
from jax.experimental import pallas as pl
from jax.experimental.pallas import tpu as pltpu


def _resblock_kernel(H, W, C, K,
                     x_ref, rc_ref, w1_ref, b1_ref, w2_ref, b2_ref, out_ref):
    """One grid step = one image in (C, H*W) lane-dense layout.

    A KxK 'same' conv tap at spatial offset (dy, dx) is the input rolled by
    dy*W + dx along the flattened lane axis with out-of-range positions zeroed
    by a border mask; each tap contributes one (C,C)@(C,H*W) MXU dot-add.
    """
    HW = H * W
    P = K // 2

    x = x_ref[0]                      # (C, H*W) f32, lane-dense
    row = rc_ref[0:1, :]              # (1, H*W) int32 : p // W  (precomputed)
    col = rc_ref[1:2, :]              # (1, H*W) int32 : p %  W  (precomputed)

    # Per-tap (lane shift, border mask).  Built once, reused by both convs.
    taps = []
    for ky in range(K):
        for kx in range(K):
            dy, dx = ky - P, kx - P
            if dy == 0 and dx == 0:
                taps.append((0, None))                 # center tap: no roll/mask
                continue
            shift = (-(dy * W + dx)) % HW              # rolled[p] = x[p + dy*W + dx]
            mask = ((row >= -dy) & (row < H - dy) &
                    (col >= -dx) & (col < W - dx))     # (1, H*W); bcast over C
            taps.append((shift, mask))

    def tap_patch(a, shift, mask):
        p = pltpu.roll(a, shift, axis=1) if shift else a
        return p if mask is None else jnp.where(mask, p, 0.0)

    def conv(a, w_ref, b_ref):
        # Chain of MXU dot-adds into a single f32 accumulator.
        acc = None
        for t, (shift, mask) in enumerate(taps):
            d = jnp.dot(w_ref[t], tap_patch(a, shift, mask),
                        preferred_element_type=jnp.float32)
            acc = d if acc is None else acc + d
        return acc + b_ref[...]                        # (C,1) broadcasts over lanes

    h1 = jnp.maximum(conv(x, w1_ref, b1_ref), 0.0)     # conv1 + bias + ReLU
    out = conv(h1, w2_ref, b2_ref) + x                 # conv2 + bias + residual
    out_ref[0] = out.astype(out_ref.dtype)


def resblock_pallas(x_nchw, w1, b1, w2, b2):
    """x_nchw: (N, C, H, W) float32 (PyTorch layout). Returns (N, C, H, W)."""
    N, C, H, W = x_nchw.shape
    K = w1.shape[0]
    HW = H * W

    # NCHW row-major already flattens to the (C, H*W) layout the kernel wants:
    # no transpose, no halo pad, no duplicate HBM copy of x.
    x_flat = x_nchw.reshape(N, C, HW).astype(jnp.float32)

    # Precomputed per-position row/col indices (avoids vector int div/mod
    # inside the kernel).  Tiny, constant block index -> DMA'd once.
    rr = jnp.arange(HW, dtype=jnp.int32) // W
    cc = jnp.arange(HW, dtype=jnp.int32) % W
    rowcol = jnp.stack([rr, cc], axis=0)                         # (2, H*W)

    # HWIO (ky, kx, ci, co) -> (tap, co, ci) with tap = ky*K + kx.
    w1_t = jnp.transpose(w1, (0, 1, 3, 2)).reshape(K * K, C, C).astype(jnp.float32)
    w2_t = jnp.transpose(w2, (0, 1, 3, 2)).reshape(K * K, C, C).astype(jnp.float32)
    b1_c = b1.reshape(C, 1).astype(jnp.float32)
    b2_c = b2.reshape(C, 1).astype(jnp.float32)

    kernel = functools.partial(_resblock_kernel, H, W, C, K)
    out_flat = pl.pallas_call(
        kernel,
        out_shape=jax.ShapeDtypeStruct((N, C, HW), jnp.float32),
        grid=(N,),
        in_specs=[
            pl.BlockSpec((1, C, HW), lambda n: (n, 0, 0)),       # x (one image)
            pl.BlockSpec((2, HW), lambda n: (0, 0)),             # row/col map
            pl.BlockSpec((K * K, C, C), lambda n: (0, 0, 0)),    # w1 taps
            pl.BlockSpec((C, 1), lambda n: (0, 0)),              # b1
            pl.BlockSpec((K * K, C, C), lambda n: (0, 0, 0)),    # w2 taps
            pl.BlockSpec((C, 1), lambda n: (0, 0)),              # b2
        ],
        out_specs=pl.BlockSpec((1, C, HW), lambda n: (n, 0, 0)), # lane-dense out
        compiler_params=pltpu.CompilerParams(
            dimension_semantics=("parallel",),   # N=2 -> both v7x TensorCores
            vmem_limit_bytes=32 * 1024 * 1024,   # explicit; safe on v5e/v6e/v7x
        ),
    )(x_flat, rowcol, w1_t, b1_c, w2_t, b2_c)

    return out_flat.reshape(N, C, H, W)


def resblock_ref(x_nchw, w1, b1, w2, b2):
    """Pure-JAX reference (same math as the PyTorch module)."""
    dn = ('NCHW', 'HWIO', 'NCHW')
    h = lax.conv_general_dilated(x_nchw, w1, (1, 1), 'SAME', dimension_numbers=dn)
    h = jnp.maximum(h + b1.reshape(1, -1, 1, 1), 0.0)
    o = lax.conv_general_dilated(h, w2, (1, 1), 'SAME', dimension_numbers=dn)
    return o + b2.reshape(1, -1, 1, 1) + x_nchw


if __name__ == "__main__":
    N, C, H, W, K = 2, 4, 16, 16, 3
    key = jax.random.PRNGKey(0)
    kx_, k1, kb1, k2, kb2 = jax.random.split(key, 5)

    x = jax.random.normal(kx_, (N, C, H, W), jnp.float32)

    # Deterministic PyTorch-like init: U(-1/sqrt(fan_in), 1/sqrt(fan_in)).
    fan_in = C * K * K
    scale = 1.0 / float(fan_in) ** 0.5
    w1 = jax.random.uniform(k1, (K, K, C, C), jnp.float32, -scale, scale)
    b1 = jax.random.uniform(kb1, (C,), jnp.float32, -scale, scale)
    w2 = jax.random.uniform(k2, (K, K, C, C), jnp.float32, -scale, scale)
    b2 = jax.random.uniform(kb2, (C,), jnp.float32, -scale, scale)

    out = jax.block_until_ready(resblock_pallas(x, w1, b1, w2, b2))
    ref = resblock_ref(x, w1, b1, w2, b2)

    assert out.shape == (N, C, H, W), out.shape
    assert jnp.allclose(out, ref, atol=1e-4, rtol=1e-4), "mismatch vs reference"
    print("KERNEL_OK")
</pallas_src>

<mosaic_0001>
module attributes {stable_mosaic.version = 11 : i64} {
  func.func @_resblock_kernel(%arg0: i32, %arg1: memref<1x4x256xf32, #tpu.memory_space<vmem>>, %arg2: memref<2x256xi32, #tpu.memory_space<vmem>>, %arg3: memref<9x4x4xf32, #tpu.memory_space<vmem>>, %arg4: memref<4x1xf32, #tpu.memory_space<vmem>>, %arg5: memref<9x4x4xf32, #tpu.memory_space<vmem>>, %arg6: memref<4x1xf32, #tpu.memory_space<vmem>>, %arg7: memref<1x4x256xf32, #tpu.memory_space<vmem>>) attributes {dimension_semantics = [#tpu.dimension_semantics<parallel>], iteration_bounds = array<i64: 2>, scalar_prefetch = 0 : i64, scratch_operands = 0 : i64, tpu.core_type = #tpu.core_type<tc>, window_params = [{transform_indices = @transform_0, window_bounds = array<i64: 1, 4, 256>}, {pipeline_mode = #tpu.pipeline_mode<synchronous>, transform_indices = @transform_1, window_bounds = array<i64: 2, 256>}, {pipeline_mode = #tpu.pipeline_mode<synchronous>, transform_indices = @transform_2, window_bounds = array<i64: 9, 4, 4>}, {pipeline_mode = #tpu.pipeline_mode<synchronous>, transform_indices = @transform_3, window_bounds = array<i64: 4, 1>}, {pipeline_mode = #tpu.pipeline_mode<synchronous>, transform_indices = @transform_4, window_bounds = array<i64: 9, 4, 4>}, {pipeline_mode = #tpu.pipeline_mode<synchronous>, transform_indices = @transform_5, window_bounds = array<i64: 4, 1>}, {transform_indices = @transform_6, window_bounds = array<i64: 1, 4, 256>}]} {
    %c0 = arith.constant 0 : index
    %c0_0 = arith.constant 0 : index
    %c0_1 = arith.constant 0 : index
    %0 = vector.load %arg1[%c0, %c0_0, %c0_1] : memref<1x4x256xf32, #tpu.memory_space<vmem>>, vector<1x4x256xf32>
    %1 = vector.shape_cast %0 : vector<1x4x256xf32> to vector<4x256xf32>
    %c0_2 = arith.constant 0 : index
    %c0_3 = arith.constant 0 : index
    %2 = vector.load %arg2[%c0_2, %c0_3] : memref<2x256xi32, #tpu.memory_space<vmem>>, vector<1x256xi32>
    %c1 = arith.constant 1 : index
    %c0_4 = arith.constant 0 : index
    %3 = vector.load %arg2[%c1, %c0_4] : memref<2x256xi32, #tpu.memory_space<vmem>>, vector<1x256xi32>
    %c1_i32 = arith.constant 1 : i32
    %4 = vector.broadcast %c1_i32 : i32 to vector<1x256xi32>
    %5 = arith.cmpi sge, %2, %4 : vector<1x256xi32>
    %c17_i32 = arith.constant 17 : i32
    %6 = vector.broadcast %c17_i32 : i32 to vector<1x256xi32>
    %7 = arith.cmpi slt, %2, %6 : vector<1x256xi32>
    %8 = arith.andi %5, %7 : vector<1x256xi1>
    %c1_i32_5 = arith.constant 1 : i32
    %9 = vector.broadcast %c1_i32_5 : i32 to vector<1x256xi32>
    %10 = arith.cmpi sge, %3, %9 : vector<1x256xi32>
    %11 = arith.andi %8, %10 : vector<1x256xi1>
    %c17_i32_6 = arith.constant 17 : i32
    %12 = vector.broadcast %c17_i32_6 : i32 to vector<1x256xi32>
    %13 = arith.cmpi slt, %3, %12 : vector<1x256xi32>
    %14 = arith.andi %11, %13 : vector<1x256xi1>
    %c1_i32_7 = arith.constant 1 : i32
    %15 = vector.broadcast %c1_i32_7 : i32 to vector<1x256xi32>
    %16 = arith.cmpi sge, %2, %15 : vector<1x256xi32>
    %c17_i32_8 = arith.constant 17 : i32
    %17 = vector.broadcast %c17_i32_8 : i32 to vector<1x256xi32>
    %18 = arith.cmpi slt, %2, %17 : vector<1x256xi32>
    %19 = arith.andi %16, %18 : vector<1x256xi1>
    %c0_i32 = arith.constant 0 : i32
    %20 = vector.broadcast %c0_i32 : i32 to vector<1x256xi32>
    %21 = arith.cmpi sge, %3, %20 : vector<1x256xi32>
    %22 = arith.andi %19, %21 : vector<1x256xi1>
    %c16_i32 = arith.constant 16 : i32
    %23 = vector.broadcast %c16_i32 : i32 to vector<1x256xi32>
    %24 = arith.cmpi slt, %3, %23 : vector<1x256xi32>
    %25 = arith.andi %22, %24 : vector<1x256xi1>
    %c1_i32_9 = arith.constant 1 : i32
    %26 = vector.broadcast %c1_i32_9 : i32 to vector<1x256xi32>
    %27 = arith.cmpi sge, %2, %26 : vector<1x256xi32>
    %c17_i32_10 = arith.constant 17 : i32
    %28 = vector.broadcast %c17_i32_10 : i32 to vector<1x256xi32>
    %29 = arith.cmpi slt, %2, %28 : vector<1x256xi32>
    %30 = arith.andi %27, %29 : vector<1x256xi1>
    %c-1_i32 = arith.constant -1 : i32
    %31 = vector.broadcast %c-1_i32 : i32 to vector<1x256xi32>
    %32 = arith.cmpi sge, %3, %31 : vector<1x256xi32>
    %33 = arith.andi %30, %32 : vector<1x256xi1>
    %c15_i32 = arith.constant 15 : i32
    %34 = vector.broadcast %c15_i32 : i32 to vector<1x256xi32>
    %35 = arith.cmpi slt, %3, %34 : vector<1x256xi32>
    %36 = arith.andi %33, %35 : vector<1x256xi1>
    %c0_i32_11 = arith.constant 0 : i32
    %37 = vector.broadcast %c0_i32_11 : i32 to vector<1x256xi32>
    %38 = arith.cmpi sge, %2, %37 : vector<1x256xi32>
    %c16_i32_12 = arith.constant 16 : i32
    %39 = vector.broadcast %c16_i32_12 : i32 to vector<1x256xi32>
    %40 = arith.cmpi slt, %2, %39 : vector<1x256xi32>
    %41 = arith.andi %38, %40 : vector<1x256xi1>
    %c1_i32_13 = arith.constant 1 : i32
    %42 = vector.broadcast %c1_i32_13 : i32 to vector<1x256xi32>
    %43 = arith.cmpi sge, %3, %42 : vector<1x256xi32>
    %44 = arith.andi %41, %43 : vector<1x256xi1>
    %c17_i32_14 = arith.constant 17 : i32
    %45 = vector.broadcast %c17_i32_14 : i32 to vector<1x256xi32>
    %46 = arith.cmpi slt, %3, %45 : vector<1x256xi32>
    %47 = arith.andi %44, %46 : vector<1x256xi1>
    %c0_i32_15 = arith.constant 0 : i32
    %48 = vector.broadcast %c0_i32_15 : i32 to vector<1x256xi32>
    %49 = arith.cmpi sge, %2, %48 : vector<1x256xi32>
    %c16_i32_16 = arith.constant 16 : i32
    %50 = vector.broadcast %c16_i32_16 : i32 to vector<1x256xi32>
    %51 = arith.cmpi slt, %2, %50 : vector<1x256xi32>
    %52 = arith.andi %49, %51 : vector<1x256xi1>
    %c-1_i32_17 = arith.constant -1 : i32
    %53 = vector.broadcast %c-1_i32_17 : i32 to vector<1x256xi32>
    %54 = arith.cmpi sge, %3, %53 : vector<1x256xi32>
    %55 = arith.andi %52, %54 : vector<1x256xi1>
    %c15_i32_18 = arith.constant 15 : i32
    %56 = vector.broadcast %c15_i32_18 : i32 to vector<1x256xi32>
    %57 = arith.cmpi slt, %3, %56 : vector<1x256xi32>
    %58 = arith.andi %55, %57 : vector<1x256xi1>
    %c-1_i32_19 = arith.constant -1 : i32
    %59 = vector.broadcast %c-1_i32_19 : i32 to vector<1x256xi32>
    %60 = arith.cmpi sge, %2, %59 : vector<1x256xi32>
    %c15_i32_20 = arith.constant 15 : i32
    %61 = vector.broadcast %c15_i32_20 : i32 to vector<1x256xi32>
    %62 = arith.cmpi slt, %2, %61 : vector<1x256xi32>
    %63 = arith.andi %60, %62 : vector<1x256xi1>
    %c1_i32_21 = arith.constant 1 : i32
    %64 = vector.broadcast %c1_i32_21 : i32 to vector<1x256xi32>
    %65 = arith.cmpi sge, %3, %64 : vector<1x256xi32>
    %66 = arith.andi %63, %65 : vector<1x256xi1>
    %c17_i32_22 = arith.constant 17 : i32
    %67 = vector.broadcast %c17_i32_22 : i32 to vector<1x256xi32>
    %68 = arith.cmpi slt, %3, %67 : vector<1x256xi32>
    %69 = arith.andi %66, %68 : vector<1x256xi1>
    %c-1_i32_23 = arith.constant -1 : i32
    %70 = vector.broadcast %c-1_i32_23 : i32 to vector<1x256xi32>
    %71 = arith.cmpi sge, %2, %70 : vector<1x256xi32>
    %c15_i32_24 = arith.constant 15 : i32
    %72 = vector.broadcast %c15_i32_24 : i32 to vector<1x256xi32>
    %73 = arith.cmpi slt, %2, %72 : vector<1x256xi32>
    %74 = arith.andi %71, %73 : vector<1x256xi1>
    %c0_i32_25 = arith.constant 0 : i32
    %75 = vector.broadcast %c0_i32_25 : i32 to vector<1x256xi32>
    %76 = arith.cmpi sge, %3, %75 : vector<1x256xi32>
    %77 = arith.andi %74, %76 : vector<1x256xi1>
    %c16_i32_26 = arith.constant 16 : i32
    %78 = vector.broadcast %c16_i32_26 : i32 to vector<1x256xi32>
    %79 = arith.cmpi slt, %3, %78 : vector<1x256xi32>
    %80 = arith.andi %77, %79 : vector<1x256xi1>
    %c-1_i32_27 = arith.constant -1 : i32
    %81 = vector.broadcast %c-1_i32_27 : i32 to vector<1x256xi32>
    %82 = arith.cmpi sge, %2, %81 : vector<1x256xi32>
    %c15_i32_28 = arith.constant 15 : i32
    %83 = vector.broadcast %c15_i32_28 : i32 to vector<1x256xi32>
    %84 = arith.cmpi slt, %2, %83 : vector<1x256xi32>
    %85 = arith.andi %82, %84 : vector<1x256xi1>
    %c-1_i32_29 = arith.constant -1 : i32
    %86 = vector.broadcast %c-1_i32_29 : i32 to vector<1x256xi32>
    %87 = arith.cmpi sge, %3, %86 : vector<1x256xi32>
    %88 = arith.andi %85, %87 : vector<1x256xi1>
    %c15_i32_30 = arith.constant 15 : i32
    %89 = vector.broadcast %c15_i32_30 : i32 to vector<1x256xi32>
    %90 = arith.cmpi slt, %3, %89 : vector<1x256xi32>
    %91 = arith.andi %88, %90 : vector<1x256xi1>
    %c0_31 = arith.constant 0 : index
    %c0_32 = arith.constant 0 : index
    %c0_33 = arith.constant 0 : index
    %92 = vector.load %arg3[%c0_31, %c0_32, %c0_33] : memref<9x4x4xf32, #tpu.memory_space<vmem>>, vector<1x4x4xf32>
    %93 = vector.shape_cast %92 : vector<1x4x4xf32> to vector<4x4xf32>
    %c17_i32_34 = arith.constant 17 : i32
    %94 = tpu.dynamic_rotate %1 by %c17_i32_34 dim 1 : vector<4x256xf32>, i32 -> vector<4x256xf32>
    %cst = arith.constant 0.000000e+00 : f32
    %95 = vector.shape_cast %14 : vector<1x256xi1> to vector<1x256xi1>
    %96 = vector.broadcast %95 : vector<1x256xi1> to vector<4x256xi1>
    %97 = vector.broadcast %cst : f32 to vector<4x256xf32>
    %98 = arith.select %96, %94, %97 : vector<4x256xi1>, vector<4x256xf32>
    %cst_35 = arith.constant dense<0.000000e+00> : vector<4x256xf32>
    %99 = tpu.matmul %93, %98, %cst_35 {dimension_numbers = #tpu.dot_dimension_numbers<[1], [0], [0], [1], [0, 0, 1, 1], [], []>} : vector<4x4xf32>, vector<4x256xf32>, vector<4x256xf32> -> vector<4x256xf32>
    %c1_36 = arith.constant 1 : index
    %c0_37 = arith.constant 0 : index
    %c0_38 = arith.constant 0 : index
    %100 = vector.load %arg3[%c1_36, %c0_37, %c0_38] : memref<9x4x4xf32, #tpu.memory_space<vmem>>, vector<1x4x4xf32>
    %101 = vector.shape_cast %100 : vector<1x4x4xf32> to vector<4x4xf32>
    %c16_i32_39 = arith.constant 16 : i32
    %102 = tpu.dynamic_rotate %1 by %c16_i32_39 dim 1 : vector<4x256xf32>, i32 -> vector<4x256xf32>
    %cst_40 = arith.constant 0.000000e+00 : f32
    %103 = vector.shape_cast %25 : vector<1x256xi1> to vector<1x256xi1>
    %104 = vector.broadcast %103 : vector<1x256xi1> to vector<4x256xi1>
    %105 = vector.broadcast %cst_40 : f32 to vector<4x256xf32>
    %106 = arith.select %104, %102, %105 : vector<4x256xi1>, vector<4x256xf32>
    %cst_41 = arith.constant dense<0.000000e+00> : vector<4x256xf32>
    %107 = tpu.matmul %101, %106, %cst_41 {dimension_numbers = #tpu.dot_dimension_numbers<[1], [0], [0], [1], [0, 0, 1, 1], [], []>} : vector<4x4xf32>, vector<4x256xf32>, vector<4x256xf32> -> vector<4x256xf32>
    %108 = arith.addf %99, %107 : vector<4x256xf32>
    %c2 = arith.constant 2 : index
    %c0_42 = arith.constant 0 : index
    %c0_43 = arith.constant 0 : index
    %109 = vector.load %arg3[%c2, %c0_42, %c0_43] : memref<9x4x4xf32, #tpu.memory_space<vmem>>, vector<1x4x4xf32>
    %110 = vector.shape_cast %109 : vector<1x4x4xf32> to vector<4x4xf32>
    %c15_i32_44 = arith.constant 15 : i32
    %111 = tpu.dynamic_rotate %1 by %c15_i32_44 dim 1 : vector<4x256xf32>, i32 -> vector<4x256xf32>
    %cst_45 = arith.constant 0.000000e+00 : f32
    %112 = vector.shape_cast %36 : vector<1x256xi1> to vector<1x256xi1>
    %113 = vector.broadcast %112 : vector<1x256xi1> to vector<4x256xi1>
    %114 = vector.broadcast %cst_45 : f32 to vector<4x256xf32>
    %115 = arith.select %113, %111, %114 : vector<4x256xi1>, vector<4x256xf32>
    %cst_46 = arith.constant dense<0.000000e+00> : vector<4x256xf32>
    %116 = tpu.matmul %110, %115, %cst_46 {dimension_numbers = #tpu.dot_dimension_numbers<[1], [0], [0], [1], [0, 0, 1, 1], [], []>} : vector<4x4xf32>, vector<4x256xf32>, vector<4x256xf32> -> vector<4x256xf32>
    %117 = arith.addf %108, %116 : vector<4x256xf32>
    %c3 = arith.constant 3 : index
    %c0_47 = arith.constant 0 : index
    %c0_48 = arith.constant 0 : index
    %118 = vector.load %arg3[%c3, %c0_47, %c0_48] : memref<9x4x4xf32, #tpu.memory_space<vmem>>, vector<1x4x4xf32>
    %119 = vector.shape_cast %118 : vector<1x4x4xf32> to vector<4x4xf32>
    %c1_i32_49 = arith.constant 1 : i32
    %120 = tpu.dynamic_rotate %1 by %c1_i32_49 dim 1 : vector<4x256xf32>, i32 -> vector<4x256xf32>
    %cst_50 = arith.constant 0.000000e+00 : f32
    %121 = vector.shape_cast %47 : vector<1x256xi1> to vector<1x256xi1>
    %122 = vector.broadcast %121 : vector<1x256xi1> to vector<4x256xi1>
    %123 = vector.broadcast %cst_50 : f32 to vector<4x256xf32>
    %124 = arith.select %122, %120, %123 : vector<4x256xi1>, vector<4x256xf32>
    %cst_51 = arith.constant dense<0.000000e+00> : vector<4x256xf32>
    %125 = tpu.matmul %119, %124, %cst_51 {dimension_numbers = #tpu.dot_dimension_numbers<[1], [0], [0], [1], [0, 0, 1, 1], [], []>} : vector<4x4xf32>, vector<4x256xf32>, vector<4x256xf32> -> vector<4x256xf32>
    %126 = arith.addf %117, %125 : vector<4x256xf32>
    %c4 = arith.constant 4 : index
    %c0_52 = arith.constant 0 : index
    %c0_53 = arith.constant 0 : index
    %127 = vector.load %arg3[%c4, %c0_52, %c0_53] : memref<9x4x4xf32, #tpu.memory_space<vmem>>, vector<1x4x4xf32>
    %128 = vector.shape_cast %127 : vector<1x4x4xf32> to vector<4x4xf32>
    %cst_54 = arith.constant dense<0.000000e+00> : vector<4x256xf32>
    %129 = tpu.matmul %128, %1, %cst_54 {dimension_numbers = #tpu.dot_dimension_numbers<[1], [0], [0], [1], [0, 0, 1, 1], [], []>} : vector<4x4xf32>, vector<4x256xf32>, vector<4x256xf32> -> vector<4x256xf32>
    %130 = arith.addf %126, %129 : vector<4x256xf32>
    %c5 = arith.constant 5 : index
    %c0_55 = arith.constant 0 : index
    %c0_56 = arith.constant 0 : index
    %131 = vector.load %arg3[%c5, %c0_55, %c0_56] : memref<9x4x4xf32, #tpu.memory_space<vmem>>, vector<1x4x4xf32>
    %132 = vector.shape_cast %131 : vector<1x4x4xf32> to vector<4x4xf32>
    %c255_i32 = arith.constant 255 : i32
    %133 = tpu.dynamic_rotate %1 by %c255_i32 dim 1 : vector<4x256xf32>, i32 -> vector<4x256xf32>
    %cst_57 = arith.constant 0.000000e+00 : f32
    %134 = vector.shape_cast %58 : vector<1x256xi1> to vector<1x256xi1>
    %135 = vector.broadcast %134 : vector<1x256xi1> to vector<4x256xi1>
    %136 = vector.broadcast %cst_57 : f32 to vector<4x256xf32>
    %137 = arith.select %135, %133, %136 : vector<4x256xi1>, vector<4x256xf32>
    %cst_58 = arith.constant dense<0.000000e+00> : vector<4x256xf32>
    %138 = tpu.matmul %132, %137, %cst_58 {dimension_numbers = #tpu.dot_dimension_numbers<[1], [0], [0], [1], [0, 0, 1, 1], [], []>} : vector<4x4xf32>, vector<4x256xf32>, vector<4x256xf32> -> vector<4x256xf32>
    %139 = arith.addf %130, %138 : vector<4x256xf32>
    %c6 = arith.constant 6 : index
    %c0_59 = arith.constant 0 : index
    %c0_60 = arith.constant 0 : index
    %140 = vector.load %arg3[%c6, %c0_59, %c0_60] : memref<9x4x4xf32, #tpu.memory_space<vmem>>, vector<1x4x4xf32>
    %141 = vector.shape_cast %140 : vector<1x4x4xf32> to vector<4x4xf32>
    %c241_i32 = arith.constant 241 : i32
    %142 = tpu.dynamic_rotate %1 by %c241_i32 dim 1 : vector<4x256xf32>, i32 -> vector<4x256xf32>
    %cst_61 = arith.constant 0.000000e+00 : f32
    %143 = vector.shape_cast %69 : vector<1x256xi1> to vector<1x256xi1>
    %144 = vector.broadcast %143 : vector<1x256xi1> to vector<4x256xi1>
    %145 = vector.broadcast %cst_61 : f32 to vector<4x256xf32>
    %146 = arith.select %144, %142, %145 : vector<4x256xi1>, vector<4x256xf32>
    %cst_62 = arith.constant dense<0.000000e+00> : vector<4x256xf32>
    %147 = tpu.matmul %141, %146, %cst_62 {dimension_numbers = #tpu.dot_dimension_numbers<[1], [0], [0], [1], [0, 0, 1, 1], [], []>} : vector<4x4xf32>, vector<4x256xf32>, vector<4x256xf32> -> vector<4x256xf32>
    %148 = arith.addf %139, %147 : vector<4x256xf32>
    %c7 = arith.constant 7 : index
    %c0_63 = arith.constant 0 : index
    %c0_64 = arith.constant 0 : index
    %149 = vector.load %arg3[%c7, %c0_63, %c0_64] : memref<9x4x4xf32, #tpu.memory_space<vmem>>, vector<1x4x4xf32>
    %150 = vector.shape_cast %149 : vector<1x4x4xf32> to vector<4x4xf32>
    %c240_i32 = arith.constant 240 : i32
    %151 = tpu.dynamic_rotate %1 by %c240_i32 dim 1 : vector<4x256xf32>, i32 -> vector<4x256xf32>
    %cst_65 = arith.constant 0.000000e+00 : f32
    %152 = vector.shape_cast %80 : vector<1x256xi1> to vector<1x256xi1>
    %153 = vector.broadcast %152 : vector<1x256xi1> to vector<4x256xi1>
    %154 = vector.broadcast %cst_65 : f32 to vector<4x256xf32>
    %155 = arith.select %153, %151, %154 : vector<4x256xi1>, vector<4x256xf32>
    %cst_66 = arith.constant dense<0.000000e+00> : vector<4x256xf32>
    %156 = tpu.matmul %150, %155, %cst_66 {dimension_numbers = #tpu.dot_dimension_numbers<[1], [0], [0], [1], [0, 0, 1, 1], [], []>} : vector<4x4xf32>, vector<4x256xf32>, vector<4x256xf32> -> vector<4x256xf32>
    %157 = arith.addf %148, %156 : vector<4x256xf32>
    %c8 = arith.constant 8 : index
    %c0_67 = arith.constant 0 : index
    %c0_68 = arith.constant 0 : index
    %158 = vector.load %arg3[%c8, %c0_67, %c0_68] : memref<9x4x4xf32, #tpu.memory_space<vmem>>, vector<1x4x4xf32>
    %159 = vector.shape_cast %158 : vector<1x4x4xf32> to vector<4x4xf32>
    %c239_i32 = arith.constant 239 : i32
    %160 = tpu.dynamic_rotate %1 by %c239_i32 dim 1 : vector<4x256xf32>, i32 -> vector<4x256xf32>
    %cst_69 = arith.constant 0.000000e+00 : f32
    %161 = vector.shape_cast %91 : vector<1x256xi1> to vector<1x256xi1>
    %162 = vector.broadcast %161 : vector<1x256xi1> to vector<4x256xi1>
    %163 = vector.broadcast %cst_69 : f32 to vector<4x256xf32>
    %164 = arith.select %162, %160, %163 : vector<4x256xi1>, vector<4x256xf32>
    %cst_70 = arith.constant dense<0.000000e+00> : vector<4x256xf32>
    %165 = tpu.matmul %159, %164, %cst_70 {dimension_numbers = #tpu.dot_dimension_numbers<[1], [0], [0], [1], [0, 0, 1, 1], [], []>} : vector<4x4xf32>, vector<4x256xf32>, vector<4x256xf32> -> vector<4x256xf32>
    %166 = arith.addf %157, %165 : vector<4x256xf32>
    %c0_71 = arith.constant 0 : index
    %c0_72 = arith.constant 0 : index
    %167 = vector.load %arg4[%c0_71, %c0_72] : memref<4x1xf32, #tpu.memory_space<vmem>>, vector<4x1xf32>
    %168 = vector.broadcast %167 : vector<4x1xf32> to vector<4x256xf32>
    %169 = arith.addf %166, %168 : vector<4x256xf32>
    %cst_73 = arith.constant 0.000000e+00 : f32
    %170 = vector.broadcast %cst_73 : f32 to vector<4x256xf32>
    %171 = arith.maximumf %169, %170 : vector<4x256xf32>
    %c0_74 = arith.constant 0 : index
    %c0_75 = arith.constant 0 : index
    %c0_76 = arith.constant 0 : index
    %172 = vector.load %arg5[%c0_74, %c0_75, %c0_76] : memref<9x4x4xf32, #tpu.memory_space<vmem>>, vector<1x4x4xf32>
    %173 = vector.shape_cast %172 : vector<1x4x4xf32> to vector<4x4xf32>
    %c17_i32_77 = arith.constant 17 : i32
    %174 = tpu.dynamic_rotate %171 by %c17_i32_77 dim 1 : vector<4x256xf32>, i32 -> vector<4x256xf32>
    %cst_78 = arith.constant 0.000000e+00 : f32
    %175 = vector.shape_cast %14 : vector<1x256xi1> to vector<1x256xi1>
    %176 = vector.broadcast %175 : vector<1x256xi1> to vector<4x256xi1>
    %177 = vector.broadcast %cst_78 : f32 to vector<4x256xf32>
    %178 = arith.select %176, %174, %177 : vector<4x256xi1>, vector<4x256xf32>
    %cst_79 = arith.constant dense<0.000000e+00> : vector<4x256xf32>
    %179 = tpu.matmul %173, %178, %cst_79 {dimension_numbers = #tpu.dot_dimension_numbers<[1], [0], [0], [1], [0, 0, 1, 1], [], []>} : vector<4x4xf32>, vector<4x256xf32>, vector<4x256xf32> -> vector<4x256xf32>
    %c1_80 = arith.constant 1 : index
    %c0_81 = arith.constant 0 : index
    %c0_82 = arith.constant 0 : index
    %180 = vector.load %arg5[%c1_80, %c0_81, %c0_82] : memref<9x4x4xf32, #tpu.memory_space<vmem>>, vector<1x4x4xf32>
    %181 = vector.shape_cast %180 : vector<1x4x4xf32> to vector<4x4xf32>
    %c16_i32_83 = arith.constant 16 : i32
    %182 = tpu.dynamic_rotate %171 by %c16_i32_83 dim 1 : vector<4x256xf32>, i32 -> vector<4x256xf32>
    %cst_84 = arith.constant 0.000000e+00 : f32
    %183 = vector.shape_cast %25 : vector<1x256xi1> to vector<1x256xi1>
    %184 = vector.broadcast %183 : vector<1x256xi1> to vector<4x256xi1>
    %185 = vector.broadcast %cst_84 : f32 to vector<4x256xf32>
    %186 = arith.select %184, %182, %185 : vector<4x256xi1>, vector<4x256xf32>
    %cst_85 = arith.constant dense<0.000000e+00> : vector<4x256xf32>
    %187 = tpu.matmul %181, %186, %cst_85 {dimension_numbers = #tpu.dot_dimension_numbers<[1], [0], [0], [1], [0, 0, 1, 1], [], []>} : vector<4x4xf32>, vector<4x256xf32>, vector<4x256xf32> -> vector<4x256xf32>
    %188 = arith.addf %179, %187 : vector<4x256xf32>
    %c2_86 = arith.constant 2 : index
    %c0_87 = arith.constant 0 : index
    %c0_88 = arith.constant 0 : index
    %189 = vector.load %arg5[%c2_86, %c0_87, %c0_88] : memref<9x4x4xf32, #tpu.memory_space<vmem>>, vector<1x4x4xf32>
    %190 = vector.shape_cast %189 : vector<1x4x4xf32> to vector<4x4xf32>
    %c15_i32_89 = arith.constant 15 : i32
    %191 = tpu.dynamic_rotate %171 by %c15_i32_89 dim 1 : vector<4x256xf32>, i32 -> vector<4x256xf32>
    %cst_90 = arith.constant 0.000000e+00 : f32
    %192 = vector.shape_cast %36 : vector<1x256xi1> to vector<1x256xi1>
    %193 = vector.broadcast %192 : vector<1x256xi1> to vector<4x256xi1>
    %194 = vector.broadcast %cst_90 : f32 to vector<4x256xf32>
    %195 = arith.select %193, %191, %194 : vector<4x256xi1>, vector<4x256xf32>
    %cst_91 = arith.constant dense<0.000000e+00> : vector<4x256xf32>
    %196 = tpu.matmul %190, %195, %cst_91 {dimension_numbers = #tpu.dot_dimension_numbers<[1], [0], [0], [1], [0, 0, 1, 1], [], []>} : vector<4x4xf32>, vector<4x256xf32>, vector<4x256xf32> -> vector<4x256xf32>
    %197 = arith.addf %188, %196 : vector<4x256xf32>
    %c3_92 = arith.constant 3 : index
    %c0_93 = arith.constant 0 : index
    %c0_94 = arith.constant 0 : index
    %198 = vector.load %arg5[%c3_92, %c0_93, %c0_94] : memref<9x4x4xf32, #tpu.memory_space<vmem>>, vector<1x4x4xf32>
    %199 = vector.shape_cast %198 : vector<1x4x4xf32> to vector<4x4xf32>
    %c1_i32_95 = arith.constant 1 : i32
    %200 = tpu.dynamic_rotate %171 by %c1_i32_95 dim 1 : vector<4x256xf32>, i32 -> vector<4x256xf32>
    %cst_96 = arith.constant 0.000000e+00 : f32
    %201 = vector.shape_cast %47 : vector<1x256xi1> to vector<1x256xi1>
    %202 = vector.broadcast %201 : vector<1x256xi1> to vector<4x256xi1>
    %203 = vector.broadcast %cst_96 : f32 to vector<4x256xf32>
    %204 = arith.select %202, %200, %203 : vector<4x256xi1>, vector<4x256xf32>
    %cst_97 = arith.constant dense<0.000000e+00> : vector<4x256xf32>
    %205 = tpu.matmul %199, %204, %cst_97 {dimension_numbers = #tpu.dot_dimension_numbers<[1], [0], [0], [1], [0, 0, 1, 1], [], []>} : vector<4x4xf32>, vector<4x256xf32>, vector<4x256xf32> -> vector<4x256xf32>
    %206 = arith.addf %197, %205 : vector<4x256xf32>
    %c4_98 = arith.constant 4 : index
    %c0_99 = arith.constant 0 : index
    %c0_100 = arith.constant 0 : index
    %207 = vector.load %arg5[%c4_98, %c0_99, %c0_100] : memref<9x4x4xf32, #tpu.memory_space<vmem>>, vector<1x4x4xf32>
    %208 = vector.shape_cast %207 : vector<1x4x4xf32> to vector<4x4xf32>
    %cst_101 = arith.constant dense<0.000000e+00> : vector<4x256xf32>
    %209 = tpu.matmul %208, %171, %cst_101 {dimension_numbers = #tpu.dot_dimension_numbers<[1], [0], [0], [1], [0, 0, 1, 1], [], []>} : vector<4x4xf32>, vector<4x256xf32>, vector<4x256xf32> -> vector<4x256xf32>
    %210 = arith.addf %206, %209 : vector<4x256xf32>
    %c5_102 = arith.constant 5 : index
    %c0_103 = arith.constant 0 : index
    %c0_104 = arith.constant 0 : index
    %211 = vector.load %arg5[%c5_102, %c0_103, %c0_104] : memref<9x4x4xf32, #tpu.memory_space<vmem>>, vector<1x4x4xf32>
    %212 = vector.shape_cast %211 : vector<1x4x4xf32> to vector<4x4xf32>
    %c255_i32_105 = arith.constant 255 : i32
    %213 = tpu.dynamic_rotate %171 by %c255_i32_105 dim 1 : vector<4x256xf32>, i32 -> vector<4x256xf32>
    %cst_106 = arith.constant 0.000000e+00 : f32
    %214 = vector.shape_cast %58 : vector<1x256xi1> to vector<1x256xi1>
    %215 = vector.broadcast %214 : vector<1x256xi1> to vector<4x256xi1>
    %216 = vector.broadcast %cst_106 : f32 to vector<4x256xf32>
    %217 = arith.select %215, %213, %216 : vector<4x256xi1>, vector<4x256xf32>
    %cst_107 = arith.constant dense<0.000000e+00> : vector<4x256xf32>
    %218 = tpu.matmul %212, %217, %cst_107 {dimension_numbers = #tpu.dot_dimension_numbers<[1], [0], [0], [1], [0, 0, 1, 1], [], []>} : vector<4x4xf32>, vector<4x256xf32>, vector<4x256xf32> -> vector<4x256xf32>
    %219 = arith.addf %210, %218 : vector<4x256xf32>
    %c6_108 = arith.constant 6 : index
    %c0_109 = arith.constant 0 : index
    %c0_110 = arith.constant 0 : index
    %220 = vector.load %arg5[%c6_108, %c0_109, %c0_110] : memref<9x4x4xf32, #tpu.memory_space<vmem>>, vector<1x4x4xf32>
    %221 = vector.shape_cast %220 : vector<1x4x4xf32> to vector<4x4xf32>
    %c241_i32_111 = arith.constant 241 : i32
    %222 = tpu.dynamic_rotate %171 by %c241_i32_111 dim 1 : vector<4x256xf32>, i32 -> vector<4x256xf32>
    %cst_112 = arith.constant 0.000000e+00 : f32
    %223 = vector.shape_cast %69 : vector<1x256xi1> to vector<1x256xi1>
    %224 = vector.broadcast %223 : vector<1x256xi1> to vector<4x256xi1>
    %225 = vector.broadcast %cst_112 : f32 to vector<4x256xf32>
    %226 = arith.select %224, %222, %225 : vector<4x256xi1>, vector<4x256xf32>
    %cst_113 = arith.constant dense<0.000000e+00> : vector<4x256xf32>
    %227 = tpu.matmul %221, %226, %cst_113 {dimension_numbers = #tpu.dot_dimension_numbers<[1], [0], [0], [1], [0, 0, 1, 1], [], []>} : vector<4x4xf32>, vector<4x256xf32>, vector<4x256xf32> -> vector<4x256xf32>
    %228 = arith.addf %219, %227 : vector<4x256xf32>
    %c7_114 = arith.constant 7 : index
    %c0_115 = arith.constant 0 : index
    %c0_116 = arith.constant 0 : index
    %229 = vector.load %arg5[%c7_114, %c0_115, %c0_116] : memref<9x4x4xf32, #tpu.memory_space<vmem>>, vector<1x4x4xf32>
    %230 = vector.shape_cast %229 : vector<1x4x4xf32> to vector<4x4xf32>
    %c240_i32_117 = arith.constant 240 : i32
    %231 = tpu.dynamic_rotate %171 by %c240_i32_117 dim 1 : vector<4x256xf32>, i32 -> vector<4x256xf32>
    %cst_118 = arith.constant 0.000000e+00 : f32
    %232 = vector.shape_cast %80 : vector<1x256xi1> to vector<1x256xi1>
    %233 = vector.broadcast %232 : vector<1x256xi1> to vector<4x256xi1>
    %234 = vector.broadcast %cst_118 : f32 to vector<4x256xf32>
    %235 = arith.select %233, %231, %234 : vector<4x256xi1>, vector<4x256xf32>
    %cst_119 = arith.constant dense<0.000000e+00> : vector<4x256xf32>
    %236 = tpu.matmul %230, %235, %cst_119 {dimension_numbers = #tpu.dot_dimension_numbers<[1], [0], [0], [1], [0, 0, 1, 1], [], []>} : vector<4x4xf32>, vector<4x256xf32>, vector<4x256xf32> -> vector<4x256xf32>
    %237 = arith.addf %228, %236 : vector<4x256xf32>
    %c8_120 = arith.constant 8 : index
    %c0_121 = arith.constant 0 : index
    %c0_122 = arith.constant 0 : index
    %238 = vector.load %arg5[%c8_120, %c0_121, %c0_122] : memref<9x4x4xf32, #tpu.memory_space<vmem>>, vector<1x4x4xf32>
    %239 = vector.shape_cast %238 : vector<1x4x4xf32> to vector<4x4xf32>
    %c239_i32_123 = arith.constant 239 : i32
    %240 = tpu.dynamic_rotate %171 by %c239_i32_123 dim 1 : vector<4x256xf32>, i32 -> vector<4x256xf32>
    %cst_124 = arith.constant 0.000000e+00 : f32
    %241 = vector.shape_cast %91 : vector<1x256xi1> to vector<1x256xi1>
    %242 = vector.broadcast %241 : vector<1x256xi1> to vector<4x256xi1>
    %243 = vector.broadcast %cst_124 : f32 to vector<4x256xf32>
    %244 = arith.select %242, %240, %243 : vector<4x256xi1>, vector<4x256xf32>
    %cst_125 = arith.constant dense<0.000000e+00> : vector<4x256xf32>
    %245 = tpu.matmul %239, %244, %cst_125 {dimension_numbers = #tpu.dot_dimension_numbers<[1], [0], [0], [1], [0, 0, 1, 1], [], []>} : vector<4x4xf32>, vector<4x256xf32>, vector<4x256xf32> -> vector<4x256xf32>
    %246 = arith.addf %237, %245 : vector<4x256xf32>
    %c0_126 = arith.constant 0 : index
    %c0_127 = arith.constant 0 : index
    %247 = vector.load %arg6[%c0_126, %c0_127] : memref<4x1xf32, #tpu.memory_space<vmem>>, vector<4x1xf32>
    %248 = vector.broadcast %247 : vector<4x1xf32> to vector<4x256xf32>
    %249 = arith.addf %246, %248 : vector<4x256xf32>
    %250 = arith.addf %249, %1 : vector<4x256xf32>
    %c0_128 = arith.constant 0 : index
    %c0_129 = arith.constant 0 : index
    %c0_130 = arith.constant 0 : index
    %251 = vector.load %arg7[%c0_128, %c0_129, %c0_130] : memref<1x4x256xf32, #tpu.memory_space<vmem>>, vector<1x4x256xf32>
    %252 = vector.shape_cast %251 : vector<1x4x256xf32> to vector<4x256xf32>
    %253 = vector.shape_cast %250 : vector<4x256xf32> to vector<1x4x256xf32>
    tpu.vector_store %arg7[%c0_128, %c0_129, %c0_130], %253 {strides = array<i32>} : memref<1x4x256xf32, #tpu.memory_space<vmem>>, vector<1x4x256xf32>,
    return
  }
  func.func @transform_0(%arg0: i32) -> (i32, i32, i32) {
    %c0_i32 = arith.constant 0 : i32
    %c0_i32_0 = arith.constant 0 : i32
    %c0_i32_1 = arith.constant 0 : i32
    return %arg0, %c0_i32, %c0_i32_0 : i32, i32, i32
  }
  func.func @transform_1(%arg0: i32) -> (i32, i32) {
    %c0_i32 = arith.constant 0 : i32
    %c0_i32_0 = arith.constant 0 : i32
    %c0_i32_1 = arith.constant 0 : i32
    return %c0_i32, %c0_i32_0 : i32, i32
  }
  func.func @transform_2(%arg0: i32) -> (i32, i32, i32) {
    %c0_i32 = arith.constant 0 : i32
    %c0_i32_0 = arith.constant 0 : i32
    %c0_i32_1 = arith.constant 0 : i32
    %c0_i32_2 = arith.constant 0 : i32
    return %c0_i32, %c0_i32_0, %c0_i32_1 : i32, i32, i32
  }
  func.func @transform_3(%arg0: i32) -> (i32, i32) {
    %c0_i32 = arith.constant 0 : i32
    %c0_i32_0 = arith.constant 0 : i32
    %c0_i32_1 = arith.constant 0 : i32
    return %c0_i32, %c0_i32_0 : i32, i32
  }
  func.func @transform_4(%arg0: i32) -> (i32, i32, i32) {
    %c0_i32 = arith.constant 0 : i32
    %c0_i32_0 = arith.constant 0 : i32
    %c0_i32_1 = arith.constant 0 : i32
    %c0_i32_2 = arith.constant 0 : i32
    return %c0_i32, %c0_i32_0, %c0_i32_1 : i32, i32, i32
  }
  func.func @transform_5(%arg0: i32) -> (i32, i32) {
    %c0_i32 = arith.constant 0 : i32
    %c0_i32_0 = arith.constant 0 : i32
    %c0_i32_1 = arith.constant 0 : i32
    return %c0_i32, %c0_i32_0 : i32, i32
  }
  func.func @transform_6(%arg0: i32) -> (i32, i32, i32) {
    %c0_i32 = arith.constant 0 : i32
    %c0_i32_0 = arith.constant 0 : i32
    %c0_i32_1 = arith.constant 0 : i32
    return %arg0, %c0_i32, %c0_i32_0 : i32, i32, i32
  }
}

</mosaic_0001>

<llo_original>
// kernel: tpu_custom_call.1
$region0: #{tpu_custom_call.1}
  #allocation0 [shape = 'u32[]', space=smem, size = 0x4, offset = 0x4, fixed_abs, tag = 'smem constant byte address 0x4 - core index']
  #allocation1 [shape = 'u32[72,128]{1,0:T(1,128)}', space=vmem, size = 0x9000, scoped, tag = 'internal scratch']
  %s0 = inlined_call_operand.vmem [shape: f32[2,4,256], index: 0, kind: input, shape index: {}]
  %s1 = inlined_call_operand.vmem [shape: s32[2,256], index: 1, kind: input, shape index: {}]
  %s2 = inlined_call_operand.vmem [shape: f32[9,4,4], index: 2, kind: input, shape index: {}]
  %s3 = inlined_call_operand.vmem [shape: f32[4,1], index: 3, kind: input, shape index: {}]
  %s4 = inlined_call_operand.vmem [shape: f32[9,4,4], index: 4, kind: input, shape index: {}]
  %s5 = inlined_call_operand.vmem [shape: f32[4,1], index: 5, kind: input, shape index: {}]
  %s6 = inlined_call_operand.hbm [shape: f32[2,4,256], index: 6, kind: output, shape index: {}]
  %s7 = sld [smem:[#allocation0]]
  $region57: #{tpu_custom_call.1} parent=0
    _
  %s9 = ssub.s32 1, %s7
  %s10 = scalar_select 0, %s9, %s7
  $region1: #{tpu_custom_call.1} parent=0
    #allocation2 [shape = 'u8[8192]{0}', space=vmem, size = 0x2000, scoped, tag = 'output window, operand 0']
    #allocation3 [shape = 's32[2]{0}', space=sflag, size = 0x8, scoped, tag = 'scoped memory for tpu_custom_call.1']
    %11 = vsyncpa [#allocation3], 0
    %s12 = scalar_lea.sflag [#allocation3], 1
    %13 = vsyncpa %s12, 0
    loop: start=0, step=1, limit=4
    $region2: #{tpu_custom_call.1} parent=1 // loop_pre_header
      _
    $region3: #{tpu_custom_call.1} parent=1 // loop_header
      %s15 = sphi 0, %s19
      %p16 = scmp.ge.s32.totalorder %s15, 4
      %s25 = sphi 0, %s27
      %s28 = sphi 0, %s25
      %s29 = sphi 0, %s28
      %s45 = sphi 0, %s29
      %s49 = sphi 0, %s49
      %s51 = sphi 0, %s49
      %s52 = sphi 0, %s51
      %s66 = sphi 0, %s52
      %s70 = sphi 0, %s70
      %s72 = sphi 0, %s70
      %s73 = sphi 0, %s72
      %s87 = sphi 0, %s73
      %s91 = sphi 0, %s91
      %s93 = sphi 0, %s91
      %s94 = sphi 0, %s93
      %s108 = sphi 0, %s94
      %s112 = sphi 0, %s112
      %s114 = sphi 0, %s112
      %s115 = sphi 0, %s114
      %s129 = sphi 0, %s115
      %s133 = sphi 0, %s133
      %s135 = sphi 0, %s133
      %s136 = sphi 0, %s135
      %s150 = sphi 0, %s136
      %s156 = sphi 0, %s158
      %s159 = sphi 0, %s156
      %s160 = sphi 0, %s159
      %s176 = sphi 0, %s160
    $region4: #{tpu_custom_call.1} parent=1 // loop_header_branch
      %18 = sbr.rel (%p16) target = $region8
    $region5: #{tpu_custom_call.1} parent=1 // loop_body
      %s20 = ssub.s32 %s15, 1
      %s21 = ssub.s32 %s15, 2
      %s22 = sadd.s32 %s15, 1
      %s23 = ssub.s32 %s15, %s22
      %p24 = scmp.eq.s32.totalorder %s23, 0
      %s26 = sadd.s32 %s25, 1
      %s27 = scalar_select %p24, %s25, %s26
      %p30 = pneg %p24
      %p31 = scmp.eq.s32.totalorder %s15, 1
      %p32 = por %p30, %p31
      %p33 = scmp.ne.s32.totalorder %s25, %s28
      %p34 = scmp.eq.s32.totalorder %s15, 0
      %p35 = por %p33, %p34
      %p36 = scmp.ne.s32.totalorder %s25, %s28
      %p37 = scmp.eq.s32.totalorder %s20, 1
      %p38 = por %p36, %p37
      %p39 = scmp.ne.s32.totalorder %s28, %s29
      %p40 = scmp.eq.s32.totalorder %s20, 0
      %p41 = por %p39, %p40
      %p42 = scmp.ne.s32.totalorder %s28, %s29
      %p43 = scmp.eq.s32.totalorder %s21, 1
      %p44 = por %p42, %p43
      %p46 = scmp.ne.s32.totalorder %s29, %s45
      %p47 = scmp.eq.s32.totalorder %s21, 0
      %p48 = por %p46, %p47
      %s50 = sadd.s32 %s49, 1
      %p53 = scmp.eq.s32.totalorder %s15, 1
      %p54 = scmp.ne.s32.totalorder %s49, %s51
      %p55 = scmp.eq.s32.totalorder %s15, 0
      %p56 = por %p54, %p55
      %p57 = scmp.ne.s32.totalorder %s49, %s51
      %p58 = scmp.eq.s32.totalorder %s20, 1
      %p59 = por %p57, %p58
      %p60 = scmp.ne.s32.totalorder %s51, %s52
      %p61 = scmp.eq.s32.totalorder %s20, 0
      %p62 = por %p60, %p61
      %p63 = scmp.ne.s32.totalorder %s51, %s52
      %p64 = scmp.eq.s32.totalorder %s21, 1
      %p65 = por %p63, %p64
      %p67 = scmp.ne.s32.totalorder %s52, %s66
      %p68 = scmp.eq.s32.totalorder %s21, 0
      %p69 = por %p67, %p68
      %s71 = sadd.s32 %s70, 1
      %p74 = scmp.eq.s32.totalorder %s15, 1
      %p75 = scmp.ne.s32.totalorder %s70, %s72
      %p76 = scmp.eq.s32.totalorder %s15, 0
      %p77 = por %p75, %p76
      %p78 = scmp.ne.s32.totalorder %s70, %s72
      %p79 = scmp.eq.s32.totalorder %s20, 1
      %p80 = por %p78, %p79
      %p81 = scmp.ne.s32.totalorder %s72, %s73
      %p82 = scmp.eq.s32.totalorder %s20, 0
      %p83 = por %p81, %p82
      %p84 = scmp.ne.s32.totalorder %s72, %s73
      %p85 = scmp.eq.s32.totalorder %s21, 1
      %p86 = por %p84, %p85
      %p88 = scmp.ne.s32.totalorder %s73, %s87
      %p89 = scmp.eq.s32.totalorder %s21, 0
      %p90 = por %p88, %p89
      %s92 = sadd.s32 %s91, 1
      %p95 = scmp.eq.s32.totalorder %s15, 1
      %p96 = scmp.ne.s32.totalorder %s91, %s93
      %p97 = scmp.eq.s32.totalorder %s15, 0
      %p98 = por %p96, %p97
      %p99 = scmp.ne.s32.totalorder %s91, %s93
      %p100 = scmp.eq.s32.totalorder %s20, 1
      %p101 = por %p99, %p100
      %p102 = scmp.ne.s32.totalorder %s93, %s94
      %p103 = scmp.eq.s32.totalorder %s20, 0
      %p104 = por %p102, %p103
      %p105 = scmp.ne.s32.totalorder %s93, %s94
      %p106 = scmp.eq.s32.totalorder %s21, 1
      %p107 = por %p105, %p106
      %p109 = scmp.ne.s32.totalorder %s94, %s108
      %p110 = scmp.eq.s32.totalorder %s21, 0
      %p111 = por %p109, %p110
      %s113 = sadd.s32 %s112, 1
      %p116 = scmp.eq.s32.totalorder %s15, 1
      %p117 = scmp.ne.s32.totalorder %s112, %s114
      %p118 = scmp.eq.s32.totalorder %s15, 0
      %p119 = por %p117, %p118
      %p120 = scmp.ne.s32.totalorder %s112, %s114
      %p121 = scmp.eq.s32.totalorder %s20, 1
      %p122 = por %p120, %p121
      %p123 = scmp.ne.s32.totalorder %s114, %s115
      %p124 = scmp.eq.s32.totalorder %s20, 0
      %p125 = por %p123, %p124
      %p126 = scmp.ne.s32.totalorder %s114, %s115
      %p127 = scmp.eq.s32.totalorder %s21, 1
      %p128 = por %p126, %p127
      %p130 = scmp.ne.s32.totalorder %s115, %s129
      %p131 = scmp.eq.s32.totalorder %s21, 0
      %p132 = por %p130, %p131
      %s134 = sadd.s32 %s133, 1
      %p137 = scmp.eq.s32.totalorder %s15, 1
      %p138 = scmp.ne.s32.totalorder %s133, %s135
      %p139 = scmp.eq.s32.totalorder %s15, 0
      %p140 = por %p138, %p139
      %p141 = scmp.ne.s32.totalorder %s133, %s135
      %p142 = scmp.eq.s32.totalorder %s20, 1
      %p143 = por %p141, %p142
      %p144 = scmp.ne.s32.totalorder %s135, %s136
      %p145 = scmp.eq.s32.totalorder %s20, 0
      %p146 = por %p144, %p145
      %p147 = scmp.ne.s32.totalorder %s135, %s136
      %p148 = scmp.eq.s32.totalorder %s21, 1
      %p149 = por %p147, %p148
      %p151 = scmp.ne.s32.totalorder %s136, %s150
      %p152 = scmp.eq.s32.totalorder %s21, 0
      %p153 = por %p151, %p152
      %s154 = ssub.s32 %s15, %s22
      %p155 = scmp.eq.s32.totalorder %s154, 0
      %s157 = sadd.s32 %s156, 1
      %s158 = scalar_select %p155, %s156, %s157
      %p161 = pneg %p155
      %p162 = scmp.eq.s32.totalorder %s15, 1
      %p163 = por %p161, %p162
      %p164 = scmp.ne.s32.totalorder %s156, %s159
      %p165 = scmp.eq.s32.totalorder %s15, 0
      %p166 = por %p164, %p165
      %p167 = scmp.ne.s32.totalorder %s156, %s159
      %p168 = scmp.eq.s32.totalorder %s20, 1
      %p169 = por %p167, %p168
      %p170 = scmp.ne.s32.totalorder %s159, %s160
      %p171 = scmp.eq.s32.totalorder %s20, 0
      %p172 = por %p170, %p171
      %p173 = scmp.ne.s32.totalorder %s159, %s160
      %p174 = scmp.eq.s32.totalorder %s21, 1
      %p175 = por %p173, %p174
      %p177 = scmp.ne.s32.totalorder %s160, %s176
      %p178 = scmp.eq.s32.totalorder %s21, 0
      %p179 = por %p177, %p178
      %p180 = scmp.le.s32.totalorder 1, %s15
      %p181 = scmp.lt.s32.totalorder %s15, 3
      %p182 = pnand %p180, %p181
      %p183 = pneg %p182
      // Predicated region
      $region9: #{tpu_custom_call.1} parent=5 // pred_check
        _
      $region10: #{tpu_custom_call.1} parent=5 // pred_check_branch
        %185 = sbr.rel (%p182) target = $region12
      $region11: #{tpu_custom_call.1} parent=5 // pred_region
        %s186 = ssub.s32 %s15, 1
        // Predicated region
        $region13: #{tpu_custom_call.1} parent=11 // pred_check
          %p187 = pneg %p62
        $region14: #{tpu_custom_call.1} parent=11 // pred_check_branch
          %189 = sbr.rel (%p187) target = $region16
        $region15: #{tpu_custom_call.1} parent=11 // pred_region
          _
        $region16: #{tpu_custom_call.1} parent=11 // pred_fallthru
          _
        // Predicated region
        $region17: #{tpu_custom_call.1} parent=11 // pred_check
          %p190 = pneg %p83
        $region18: #{tpu_custom_call.1} parent=11 // pred_check_branch
          %192 = sbr.rel (%p190) target = $region20
        $region19: #{tpu_custom_call.1} parent=11 // pred_region
          _
        $region20: #{tpu_custom_call.1} parent=11 // pred_fallthru
          _
        // Predicated region
        $region21: #{tpu_custom_call.1} parent=11 // pred_check
          %p193 = pneg %p104
        $region22: #{tpu_custom_call.1} parent=11 // pred_check_branch
          %195 = sbr.rel (%p193) target = $region24
        $region23: #{tpu_custom_call.1} parent=11 // pred_region
          _
        $region24: #{tpu_custom_call.1} parent=11 // pred_fallthru
          _
        // Predicated region
        $region25: #{tpu_custom_call.1} parent=11 // pred_check
          %p196 = pneg %p125
        $region26: #{tpu_custom_call.1} parent=11 // pred_check_branch
          %198 = sbr.rel (%p196) target = $region28
        $region27: #{tpu_custom_call.1} parent=11 // pred_region
          _
        $region28: #{tpu_custom_call.1} parent=11 // pred_fallthru
          _
        // Predicated region
        $region29: #{tpu_custom_call.1} parent=11 // pred_check
          %p199 = pneg %p146
        $region30: #{tpu_custom_call.1} parent=11 // pred_check_branch
          %201 = sbr.rel (%p199) target = $region32
        $region31: #{tpu_custom_call.1} parent=11 // pred_region
          _
        $region32: #{tpu_custom_call.1} parent=11 // pred_fallthru
          _
      $region12: #{tpu_custom_call.1} parent=5 // pred_fallthru
        _
      %p202 = scmp.lt.s32.totalorder %s15, 2
      // Predicated region
      $region33: #{tpu_custom_call.1} parent=5 // pred_check
        %p203 = pneg %p202
      $region34: #{tpu_custom_call.1} parent=5 // pred_check_branch
        %205 = sbr.rel (%p203) target = $region36
      $region35: #{tpu_custom_call.1} parent=5 // pred_region
        // Predicated region
        $region37: #{tpu_custom_call.1} parent=35 // pred_check
          %p206 = pneg %p35
        $region38: #{tpu_custom_call.1} parent=35 // pred_check_branch
          %208 = sbr.rel (%p206) target = $region40
        $region39: #{tpu_custom_call.1} parent=35 // pred_region
          %p209 = scmp.lt.s32.totalorder %s15, 1
          %s210 = scalar_select %p209, %s15, 1
          %s211 = smul.addr %s210, 2
          %s212 = smul.addr %s211, 4
          %s213 = scalar_lea.vmem %s0, %s212
        $region40: #{tpu_custom_call.1} parent=35 // pred_fallthru
          _
      $region36: #{tpu_custom_call.1} parent=5 // pred_fallthru
        _
      %p214 = scmp.le.s32.totalorder 1, %s15
      %p215 = scmp.lt.s32.totalorder %s15, 3
      %p216 = pnand %p214, %p215
      %p217 = pneg %p216
      // Predicated region
      $region41: #{tpu_custom_call.1} parent=5 // pred_check
        _
      $region42: #{tpu_custom_call.1} parent=5 // pred_check_branch
        %219 = sbr.rel (%p216) target = $region44
      $region43: #{tpu_custom_call.1} parent=5 // pred_region
        %s220 = ssub.s32 %s15, 1
        %p221 = scmp.lt.s32.totalorder %s20, 1
        %s222 = scalar_select %p221, %s20, 1
        %s223 = smul.addr %s222, 2
        %s224 = smul.addr %s223, 4
        %s225 = scalar_lea.vmem %s0, %s224
        %p226 = pneg %p41
        %p227 = pneg %p38
        %p228 = pneg %p62
        %p229 = pneg %p59
        %p230 = pneg %p83
        %p231 = pneg %p80
        %p232 = pneg %p104
        %p233 = pneg %p101
        %p234 = pneg %p125
        %p235 = pneg %p122
        %p236 = pneg %p146
        %p237 = pneg %p143
        %p238 = pneg %p172
        %p239 = pneg %p169
        %s240 = sand.u32 %s159, 1
        %s241 = scalar_lea.sflag [#allocation3], %s240
        %s242 = sand.u32 %s159, 1
        %s243 = smul.addr %s242, 8
        %s244 = scalar_lea.vmem [#allocation2], %s243
        %p245 = scmp.lt.s32.totalorder %s20, 1
        %s246 = scalar_select %p245, %s20, 1
        %s247 = smul.addr %s246, 2
        %s248 = smul.addr %s247, 4
        %s249 = scalar_lea.vmem %s0, %s248
        %v250 = vld [vmem:[%s249] sm:$0xff]
        %v251 = vld [vmem:[%s1] ss:$2 sm:$0x3]
        %s252 = scalar_lea.vmem %s1, 1
        %v253 = vld [vmem:[%s252] ss:$2 sm:$0x3]
        %vm254 = vcmp.ge.s32.totalorder %v251, 1
        %vm255 = vcmp.lt.s32.totalorder %v251, 17
        %vm256 = vmand %vm254, %vm255
        %vm257 = vcmp.ge.s32.totalorder %v253, 1
        %vm258 = vmand %vm256, %vm257
        %vm259 = vcmp.lt.s32.totalorder %v253, 17
        %vm260 = vmand %vm258, %vm259
        %vm261 = vcmp.ge.s32.totalorder %v253, 0
        %vm262 = vmand %vm256, %vm261
        %vm263 = vcmp.lt.s32.totalorder %v253, 16
        %vm264 = vmand %vm262, %vm263
        %vm265 = vcmp.ge.s32.totalorder %v253, 4294967295
        %vm266 = vmand %vm256, %vm265
        %vm267 = vcmp.lt.s32.totalorder %v253, 15
        %vm268 = vmand %vm266, %vm267
        %vm269 = vcmp.ge.s32.totalorder %v251, 0
        %vm270 = vcmp.lt.s32.totalorder %v251, 16
        %vm271 = vmand %vm269, %vm270
        %vm272 = vmand %vm271, %vm257
        %vm273 = vmand %vm272, %vm259
        %vm274 = vmand %vm271, %vm265
        %vm275 = vmand %vm274, %vm267
        %vm276 = vcmp.ge.s32.totalorder %v251, 4294967295
        %vm277 = vcmp.lt.s32.totalorder %v251, 15
        %vm278 = vmand %vm276, %vm277
        %vm279 = vmand %vm278, %vm257
        %vm280 = vmand %vm279, %vm259
        %vm281 = vmand %vm278, %vm261
        %vm282 = vmand %vm281, %vm263
        %vm283 = vmand %vm278, %vm265
        %vm284 = vmand %vm283, %vm267
        %v285 = vld [vmem:[%s2] sm:$0xf]
        %287 = vst [vmem:[#allocation1] ss:$2 sm:$0xff] %v250
        %v288 = vld.sshfl [vmem:[#allocation1] sm:$0xff pattern:$0x75316420]
        %v289 = vld.sshfl [vmem:[#allocation1 + $0x8] sm:$0xff pattern:$0x75316420]
        %292 = vrot.lane.b32.xlu0 %v288, 17
        %v293 = vpop.permute.xlu0 %292
        %294 = vrot.lane.b32.xlu0 %v289, 17
        %v295 = vpop.permute.xlu0 %294
        %v296 = vlaneseq
        %v297 = vand.u32 %v296, 127
        %vm298 = vcmp.lt.s32.totalorder %v297, 17
        %v299 = vsel %vm298, %v293, %v295
        %v300 = vsel %vm298, %v295, %v293
        %v301 = vsel %vm260, 1, 0
        %v302 = vperm.slane %v301, 0
        %v303 = vperm.slane %v301, 1
        %vm304 = vcmp.eq.s32.totalorder %v302, 1
        %vm305 = vcmp.eq.s32.totalorder %v303, 1
        %v306 = vsel %vm304, %v300, 0.0
        %v307 = vsel %vm305, %v299, 0.0
        %s308 = scalar_lea.vmem %s2, 4
        %v309 = vld [vmem:[%s308] sm:$0xf]
        %310 = vst [vmem:[#allocation1] ss:$2 sm:$0xff] %v250
        %v311 = vld.sshfl [vmem:[#allocation1] sm:$0xff pattern:$0x75316420]
        %v312 = vld.sshfl [vmem:[#allocation1 + $0x8] sm:$0xff pattern:$0x75316420]
        %315 = vrot.lane.b32.xlu0 %v311, 16
        %v316 = vpop.permute.xlu0 %315
        %317 = vrot.lane.b32.xlu0 %v312, 16
        %v318 = vpop.permute.xlu0 %317
        %vm319 = vcmp.lt.s32.totalorder %v297, 16
        %v320 = vsel %vm319, %v316, %v318
        %v321 = vsel %vm319, %v318, %v316
        %v322 = vsel %vm264, 1, 0
        %v323 = vperm.slane %v322, 0
        %v324 = vperm.slane %v322, 1
        %vm325 = vcmp.eq.s32.totalorder %v323, 1
        %vm326 = vcmp.eq.s32.totalorder %v324, 1
        %v327 = vsel %vm325, %v321, 0.0
        %v328 = vsel %vm326, %v320, 0.0
        %vm329 = vcmask 31744
        %v331 = vsel %vm329, %v309, 0
        %vm333 = vcmask 1043456
        %v335 = vsel %vm333, %v327, 0
        %v338 = vsel %vm333, %v328, 0
        %340 = vmatpush.msra.mxu0 0.0
        %341 = vmatpush.msra.mxu0 0.0
        %342 = vmatpush.msra.mxu0 0.0
        %343 = vmatpush.msra.mxu0 0.0
        %344 = vmatpush.msra.mxu0 0.0
        %345 = vmatpush.msra.mxu0 0.0
        %346 = vmatpush.msra.mxu0 0.0
        %347 = vmatpush.msra.mxu0 0.0
        %348 = vmatpush.msra.mxu0 0.0
        %349 = vmatpush.msra.mxu0 0.0
        %350 = vmatpush.msra.mxu0 0.0
        %351 = vmatpush.msra.mxu0 0.0
        %352 = vmatpush.msra.mxu0 0.0
        %353 = vmatpush.msra.mxu0 0.0
        %354 = vmatpush.msra.mxu0 0.0
        %355 = vmatpush.msra.mxu0 %v335
        %356 = vmatmul.f32.gmra.mxu0 %v331
        %v357 = vpop.f32.mrf.mxu0
        %v358 = vadd.f32 0.0, %v357
        %359 = vdwg.mxu0
        %360 = vmatpush.msra.mxu0 0.0
        %361 = vmatpush.msra.mxu0 0.0
        %362 = vmatpush.msra.mxu0 0.0
        %363 = vmatpush.msra.mxu0 0.0
        %364 = vmatpush.msra.mxu0 0.0
        %365 = vmatpush.msra.mxu0 0.0
        %366 = vmatpush.msra.mxu0 0.0
        %367 = vmatpush.msra.mxu0 0.0
        %368 = vmatpush.msra.mxu0 0.0
        %369 = vmatpush.msra.mxu0 0.0
        %370 = vmatpush.msra.mxu0 0.0
        %371 = vmatpush.msra.mxu0 0.0
        %372 = vmatpush.msra.mxu0 0.0
        %373 = vmatpush.msra.mxu0 0.0
        %374 = vmatpush.msra.mxu0 0.0
        %375 = vmatpush.msra.mxu0 %v338
        %376 = vmatmul.f32.gmra.mxu0 %v331
        %v377 = vpop.f32.mrf.mxu0
        %v378 = vadd.f32 0.0, %v377
        %379 = vdwg.mxu0
        %v381 = vsel %vm329, %v285, 0
        %v384 = vsel %vm333, %v306, 0
        %v387 = vsel %vm333, %v307, 0
        %389 = vmatpush.msra.mxu0 0.0
        %390 = vmatpush.msra.mxu0 0.0
        %391 = vmatpush.msra.mxu0 0.0
        %392 = vmatpush.msra.mxu0 0.0
        %393 = vmatpush.msra.mxu0 0.0
        %394 = vmatpush.msra.mxu0 0.0
        %395 = vmatpush.msra.mxu0 0.0
        %396 = vmatpush.msra.mxu0 0.0
        %397 = vmatpush.msra.mxu0 0.0
        %398 = vmatpush.msra.mxu0 0.0
        %399 = vmatpush.msra.mxu0 0.0
        %400 = vmatpush.msra.mxu0 0.0
        %401 = vmatpush.msra.mxu0 0.0
        %402 = vmatpush.msra.mxu0 0.0
        %403 = vmatpush.msra.mxu0 0.0
        %404 = vmatpush.msra.mxu0 %v384
        %405 = vmatmul.f32.gmra.mxu0 %v381
        %v406 = vpop.f32.mrf.mxu0
        %v407 = vadd.f32 %v358, %v406
        %408 = vdwg.mxu0
        %409 = vmatpush.msra.mxu0 0.0
        %410 = vmatpush.msra.mxu0 0.0
        %411 = vmatpush.msra.mxu0 0.0
        %412 = vmatpush.msra.mxu0 0.0
        %413 = vmatpush.msra.mxu0 0.0
        %414 = vmatpush.msra.mxu0 0.0
        %415 = vmatpush.msra.mxu0 0.0
        %416 = vmatpush.msra.mxu0 0.0
        %417 = vmatpush.msra.mxu0 0.0
        %418 = vmatpush.msra.mxu0 0.0
        %419 = vmatpush.msra.mxu0 0.0
        %420 = vmatpush.msra.mxu0 0.0
        %421 = vmatpush.msra.mxu0 0.0
        %422 = vmatpush.msra.mxu0 0.0
        %423 = vmatpush.msra.mxu0 0.0
        %424 = vmatpush.msra.mxu0 %v387
        %425 = vmatmul.f32.gmra.mxu0 %v381
        %v426 = vpop.f32.mrf.mxu0
        %v427 = vadd.f32 %v378, %v426
        %428 = vdwg.mxu0
        %s429 = scalar_lea.vmem %s2, 8
        %v430 = vld [vmem:[%s429] sm:$0xf]
        %431 = vst [vmem:[#allocation1] ss:$2 sm:$0xff] %v250
        %v432 = vld.sshfl [vmem:[#allocation1] sm:$0xff pattern:$0x75316420]
        %v433 = vld.sshfl [vmem:[#allocation1 + $0x8] sm:$0xff pattern:$0x75316420]
        %436 = vrot.lane.b32.xlu0 %v432, 15
        %v437 = vpop.permute.xlu0 %436
        %438 = vrot.lane.b32.xlu0 %v433, 15
        %v439 = vpop.permute.xlu0 %438
        %vm440 = vcmp.lt.s32.totalorder %v297, 15
        %v441 = vsel %vm440, %v437, %v439
        %v442 = vsel %vm440, %v439, %v437
        %v443 = vsel %vm268, 1, 0
        %v444 = vperm.slane %v443, 0
        %v445 = vperm.slane %v443, 1
        %vm446 = vcmp.eq.s32.totalorder %v444, 1
        %vm447 = vcmp.eq.s32.totalorder %v445, 1
        %v448 = vsel %vm446, %v442, 0.0
        %v449 = vsel %vm447, %v441, 0.0
        %v451 = vsel %vm329, %v430, 0
        %v454 = vsel %vm333, %v448, 0
        %v457 = vsel %vm333, %v449, 0
        %459 = vmatpush.msra.mxu0 0.0
        %460 = vmatpush.msra.mxu0 0.0
        %461 = vmatpush.msra.mxu0 0.0
        %462 = vmatpush.msra.mxu0 0.0
        %463 = vmatpush.msra.mxu0 0.0
        %464 = vmatpush.msra.mxu0 0.0
        %465 = vmatpush.msra.mxu0 0.0
        %466 = vmatpush.msra.mxu0 0.0
        %467 = vmatpush.msra.mxu0 0.0
        %468 = vmatpush.msra.mxu0 0.0
        %469 = vmatpush.msra.mxu0 0.0
        %470 = vmatpush.msra.mxu0 0.0
        %471 = vmatpush.msra.mxu0 0.0
        %472 = vmatpush.msra.mxu0 0.0
        %473 = vmatpush.msra.mxu0 0.0
        %474 = vmatpush.msra.mxu0 %v454
        %475 = vmatmul.f32.gmra.mxu0 %v451
        %v476 = vpop.f32.mrf.mxu0
        %v477 = vadd.f32 0.0, %v476
        %478 = vdwg.mxu0
        %479 = vmatpush.msra.mxu0 0.0
        %480 = vmatpush.msra.mxu0 0.0
        %481 = vmatpush.msra.mxu0 0.0
        %482 = vmatpush.msra.mxu0 0.0
        %483 = vmatpush.msra.mxu0 0.0
        %484 = vmatpush.msra.mxu0 0.0
        %485 = vmatpush.msra.mxu0 0.0
        %486 = vmatpush.msra.mxu0 0.0
        %487 = vmatpush.msra.mxu0 0.0
        %488 = vmatpush.msra.mxu0 0.0
        %489 = vmatpush.msra.mxu0 0.0
        %490 = vmatpush.msra.mxu0 0.0
        %491 = vmatpush.msra.mxu0 0.0
        %492 = vmatpush.msra.mxu0 0.0
        %493 = vmatpush.msra.mxu0 0.0
        %494 = vmatpush.msra.mxu0 %v457
        %495 = vmatmul.f32.gmra.mxu0 %v451
        %v496 = vpop.f32.mrf.mxu0
        %v497 = vadd.f32 0.0, %v496
        %498 = vdwg.mxu0
        %v499 = vadd.f32 %v407, %v477
        %v500 = vadd.f32 %v427, %v497
        %s501 = scalar_lea.vmem %s2, 12
        %v502 = vld [vmem:[%s501] sm:$0xf]
        %503 = vst [vmem:[#allocation1] ss:$2 sm:$0xff] %v250
        %v504 = vld.sshfl [vmem:[#allocation1] sm:$0xff pattern:$0x75316420]
        %v505 = vld.sshfl [vmem:[#allocation1 + $0x8] sm:$0xff pattern:$0x75316420]
        %508 = vrot.lane.b32.xlu0 %v504, 1
        %v509 = vpop.permute.xlu0 %508
        %510 = vrot.lane.b32.xlu0 %v505, 1
        %v511 = vpop.permute.xlu0 %510
        %vm512 = vcmp.lt.s32.totalorder %v297, 1
        %v513 = vsel %vm512, %v509, %v511
        %v514 = vsel %vm512, %v511, %v509
        %v515 = vsel %vm273, 1, 0
        %v516 = vperm.slane %v515, 0
        %v517 = vperm.slane %v515, 1
        %vm518 = vcmp.eq.s32.totalorder %v516, 1
        %vm519 = vcmp.eq.s32.totalorder %v517, 1
        %v520 = vsel %vm518, %v514, 0.0
        %v521 = vsel %vm519, %v513, 0.0
        %v523 = vsel %vm329, %v502, 0
        %v526 = vsel %vm333, %v520, 0
        %v529 = vsel %vm333, %v521, 0
        %531 = vmatpush.msra.mxu0 0.0
        %532 = vmatpush.msra.mxu0 0.0
        %533 = vmatpush.msra.mxu0 0.0
        %534 = vmatpush.msra.mxu0 0.0
        %535 = vmatpush.msra.mxu0 0.0
        %536 = vmatpush.msra.mxu0 0.0
        %537 = vmatpush.msra.mxu0 0.0
        %538 = vmatpush.msra.mxu0 0.0
        %539 = vmatpush.msra.mxu0 0.0
        %540 = vmatpush.msra.mxu0 0.0
        %541 = vmatpush.msra.mxu0 0.0
        %542 = vmatpush.msra.mxu0 0.0
        %543 = vmatpush.msra.mxu0 0.0
        %544 = vmatpush.msra.mxu0 0.0
        %545 = vmatpush.msra.mxu0 0.0
        %546 = vmatpush.msra.mxu0 %v526
        %547 = vmatmul.f32.gmra.mxu0 %v523
        %v548 = vpop.f32.mrf.mxu0
        %v549 = vadd.f32 0.0, %v548
        %550 = vdwg.mxu0
        %551 = vmatpush.msra.mxu0 0.0
        %552 = vmatpush.msra.mxu0 0.0
        %553 = vmatpush.msra.mxu0 0.0
        %554 = vmatpush.msra.mxu0 0.0
        %555 = vmatpush.msra.mxu0 0.0
        %556 = vmatpush.msra.mxu0 0.0
        %557 = vmatpush.msra.mxu0 0.0
        %558 = vmatpush.msra.mxu0 0.0
        %559 = vmatpush.msra.mxu0 0.0
        %560 = vmatpush.msra.mxu0 0.0
        %561 = vmatpush.msra.mxu0 0.0
        %562 = vmatpush.msra.mxu0 0.0
        %563 = vmatpush.msra.mxu0 0.0
        %564 = vmatpush.msra.mxu0 0.0
        %565 = vmatpush.msra.mxu0 0.0
        %566 = vmatpush.msra.mxu0 %v529
        %567 = vmatmul.f32.gmra.mxu0 %v523
        %v568 = vpop.f32.mrf.mxu0
        %v569 = vadd.f32 0.0, %v568
        %570 = vdwg.mxu0
        %v571 = vadd.f32 %v499, %v549
        %v572 = vadd.f32 %v500, %v569
        %s573 = scalar_lea.vmem %s2, 16
        %v574 = vld [vmem:[%s573] sm:$0xf]
        %575 = vst [vmem:[#allocation1] ss:$2 sm:$0xff] %v250
        %v576 = vld.sshfl [vmem:[#allocation1] sm:$0xff pattern:$0x75316420]
        %v577 = vld.sshfl [vmem:[#allocation1 + $0x8] sm:$0xff pattern:$0x75316420]
        %v579 = vsel %vm329, %v574, 0
        %v581 = vsel %vm333, %v576, 0
        %v583 = vsel %vm333, %v577, 0
        %585 = vmatpush.msra.mxu0 0.0
        %586 = vmatpush.msra.mxu0 0.0
        %587 = vmatpush.msra.mxu0 0.0
        %588 = vmatpush.msra.mxu0 0.0
        %589 = vmatpush.msra.mxu0 0.0
        %590 = vmatpush.msra.mxu0 0.0
        %591 = vmatpush.msra.mxu0 0.0
        %592 = vmatpush.msra.mxu0 0.0
        %593 = vmatpush.msra.mxu0 0.0
        %594 = vmatpush.msra.mxu0 0.0
        %595 = vmatpush.msra.mxu0 0.0
        %596 = vmatpush.msra.mxu0 0.0
        %597 = vmatpush.msra.mxu0 0.0
        %598 = vmatpush.msra.mxu0 0.0
        %599 = vmatpush.msra.mxu0 0.0
        %600 = vmatpush.msra.mxu0 %v581
        %601 = vmatmul.f32.gmra.mxu0 %v579
        %v602 = vpop.f32.mrf.mxu0
        %v603 = vadd.f32 0.0, %v602
        %604 = vdwg.mxu0
        %605 = vmatpush.msra.mxu0 0.0
        %606 = vmatpush.msra.mxu0 0.0
        %607 = vmatpush.msra.mxu0 0.0
        %608 = vmatpush.msra.mxu0 0.0
        %609 = vmatpush.msra.mxu0 0.0
        %610 = vmatpush.msra.mxu0 0.0
        %611 = vmatpush.msra.mxu0 0.0
        %612 = vmatpush.msra.mxu0 0.0
        %613 = vmatpush.msra.mxu0 0.0
        %614 = vmatpush.msra.mxu0 0.0
        %615 = vmatpush.msra.mxu0 0.0
        %616 = vmatpush.msra.mxu0 0.0
        %617 = vmatpush.msra.mxu0 0.0
        %618 = vmatpush.msra.mxu0 0.0
        %619 = vmatpush.msra.mxu0 0.0
        %620 = vmatpush.msra.mxu0 %v583
        %621 = vmatmul.f32.gmra.mxu0 %v579
        %v622 = vpop.f32.mrf.mxu0
        %v623 = vadd.f32 0.0, %v622
        %624 = vdwg.mxu0
        %v625 = vadd.f32 %v571, %v603
        %v626 = vadd.f32 %v572, %v623
        %s627 = scalar_lea.vmem %s2, 20
        %v628 = vld [vmem:[%s627] sm:$0xf]
        %629 = vst [vmem:[#allocation1] ss:$2 sm:$0xff] %v250
        %v630 = vld.sshfl [vmem:[#allocation1] sm:$0xff pattern:$0x75316420]
        %v631 = vld.sshfl [vmem:[#allocation1 + $0x8] sm:$0xff pattern:$0x75316420]
        %634 = vrot.lane.b32.xlu0 %v630, 127
        %v635 = vpop.permute.xlu0 %634
        %636 = vrot.lane.b32.xlu0 %v631, 127
        %v637 = vpop.permute.xlu0 %636
        %vm638 = vcmp.lt.s32.totalorder %v297, 127
        %v639 = vsel %vm638, %v635, %v637
        %v640 = vsel %vm638, %v637, %v635
        %v641 = vsel %vm275, 1, 0
        %v642 = vperm.slane %v641, 0
        %v643 = vperm.slane %v641, 1
        %vm644 = vcmp.eq.s32.totalorder %v642, 1
        %vm645 = vcmp.eq.s32.totalorder %v643, 1
        %v646 = vsel %vm644, %v639, 0.0
        %v647 = vsel %vm645, %v640, 0.0
        %v649 = vsel %vm329, %v628, 0
        %v652 = vsel %vm333, %v646, 0
        %v655 = vsel %vm333, %v647, 0
        %657 = vmatpush.msra.mxu0 0.0
        %658 = vmatpush.msra.mxu0 0.0
        %659 = vmatpush.msra.mxu0 0.0
        %660 = vmatpush.msra.mxu0 0.0
        %661 = vmatpush.msra.mxu0 0.0
        %662 = vmatpush.msra.mxu0 0.0
        %663 = vmatpush.msra.mxu0 0.0
        %664 = vmatpush.msra.mxu0 0.0
        %665 = vmatpush.msra.mxu0 0.0
        %666 = vmatpush.msra.mxu0 0.0
        %667 = vmatpush.msra.mxu0 0.0
        %668 = vmatpush.msra.mxu0 0.0
        %669 = vmatpush.msra.mxu0 0.0
        %670 = vmatpush.msra.mxu0 0.0
        %671 = vmatpush.msra.mxu0 0.0
        %672 = vmatpush.msra.mxu0 %v652
        %673 = vmatmul.f32.gmra.mxu0 %v649
        %v674 = vpop.f32.mrf.mxu0
        %v675 = vadd.f32 0.0, %v674
        %676 = vdwg.mxu0
        %677 = vmatpush.msra.mxu0 0.0
        %678 = vmatpush.msra.mxu0 0.0
        %679 = vmatpush.msra.mxu0 0.0
        %680 = vmatpush.msra.mxu0 0.0
        %681 = vmatpush.msra.mxu0 0.0
        %682 = vmatpush.msra.mxu0 0.0
        %683 = vmatpush.msra.mxu0 0.0
        %684 = vmatpush.msra.mxu0 0.0
        %685 = vmatpush.msra.mxu0 0.0
        %686 = vmatpush.msra.mxu0 0.0
        %687 = vmatpush.msra.mxu0 0.0
        %688 = vmatpush.msra.mxu0 0.0
        %689 = vmatpush.msra.mxu0 0.0
        %690 = vmatpush.msra.mxu0 0.0
        %691 = vmatpush.msra.mxu0 0.0
        %692 = vmatpush.msra.mxu0 %v655
        %693 = vmatmul.f32.gmra.mxu0 %v649
        %v694 = vpop.f32.mrf.mxu0
        %v695 = vadd.f32 0.0, %v694
        %696 = vdwg.mxu0
        %v697 = vadd.f32 %v625, %v675
        %v698 = vadd.f32 %v626, %v695
        %s699 = scalar_lea.vmem %s2, 24
        %v700 = vld [vmem:[%s699] sm:$0xf]
        %701 = vst [vmem:[#allocation1] ss:$2 sm:$0xff] %v250
        %v702 = vld.sshfl [vmem:[#allocation1] sm:$0xff pattern:$0x75316420]
        %v703 = vld.sshfl [vmem:[#allocation1 + $0x8] sm:$0xff pattern:$0x75316420]
        %706 = vrot.lane.b32.xlu0 %v702, 113
        %v707 = vpop.permute.xlu0 %706
        %708 = vrot.lane.b32.xlu0 %v703, 113
        %v709 = vpop.permute.xlu0 %708
        %vm710 = vcmp.lt.s32.totalorder %v297, 113
        %v711 = vsel %vm710, %v707, %v709
        %v712 = vsel %vm710, %v709, %v707
        %v713 = vsel %vm280, 1, 0
        %v714 = vperm.slane %v713, 0
        %v715 = vperm.slane %v713, 1
        %vm716 = vcmp.eq.s32.totalorder %v714, 1
        %vm717 = vcmp.eq.s32.totalorder %v715, 1
        %v718 = vsel %vm716, %v711, 0.0
        %v719 = vsel %vm717, %v712, 0.0
        %v721 = vsel %vm329, %v700, 0
        %v724 = vsel %vm333, %v718, 0
        %v727 = vsel %vm333, %v719, 0
        %729 = vmatpush.msra.mxu0 0.0
        %730 = vmatpush.msra.mxu0 0.0
        %731 = vmatpush.msra.mxu0 0.0
        %732 = vmatpush.msra.mxu0 0.0
        %733 = vmatpush.msra.mxu0 0.0
        %734 = vmatpush.msra.mxu0 0.0
        %735 = vmatpush.msra.mxu0 0.0
        %736 = vmatpush.msra.mxu0 0.0
        %737 = vmatpush.msra.mxu0 0.0
        %738 = vmatpush.msra.mxu0 0.0
        %739 = vmatpush.msra.mxu0 0.0
        %740 = vmatpush.msra.mxu0 0.0
        %741 = vmatpush.msra.mxu0 0.0
        %742 = vmatpush.msra.mxu0 0.0
        %743 = vmatpush.msra.mxu0 0.0
        %744 = vmatpush.msra.mxu0 %v724
        %745 = vmatmul.f32.gmra.mxu0 %v721
        %v746 = vpop.f32.mrf.mxu0
        %v747 = vadd.f32 0.0, %v746
        %748 = vdwg.mxu0
        %749 = vmatpush.msra.mxu0 0.0
        %750 = vmatpush.msra.mxu0 0.0
        %751 = vmatpush.msra.mxu0 0.0
        %752 = vmatpush.msra.mxu0 0.0
        %753 = vmatpush.msra.mxu0 0.0
        %754 = vmatpush.msra.mxu0 0.0
        %755 = vmatpush.msra.mxu0 0.0
        %756 = vmatpush.msra.mxu0 0.0
        %757 = vmatpush.msra.mxu0 0.0
        %758 = vmatpush.msra.mxu0 0.0
        %759 = vmatpush.msra.mxu0 0.0
        %760 = vmatpush.msra.mxu0 0.0
        %761 = vmatpush.msra.mxu0 0.0
        %762 = vmatpush.msra.mxu0 0.0
        %763 = vmatpush.msra.mxu0 0.0
        %764 = vmatpush.msra.mxu0 %v727
        %765 = vmatmul.f32.gmra.mxu0 %v721
        %v766 = vpop.f32.mrf.mxu0
        %v767 = vadd.f32 0.0, %v766
        %768 = vdwg.mxu0
        %v769 = vadd.f32 %v697, %v747
        %v770 = vadd.f32 %v698, %v767
        %s771 = scalar_lea.vmem %s2, 28
        %v772 = vld [vmem:[%s771] sm:$0xf]
        %773 = vst [vmem:[#allocation1] ss:$2 sm:$0xff] %v250
        %v774 = vld.sshfl [vmem:[#allocation1] sm:$0xff pattern:$0x75316420]
        %v775 = vld.sshfl [vmem:[#allocation1 + $0x8] sm:$0xff pattern:$0x75316420]
        %778 = vrot.lane.b32.xlu0 %v774, 112
        %v779 = vpop.permute.xlu0 %778
        %780 = vrot.lane.b32.xlu0 %v775, 112
        %v781 = vpop.permute.xlu0 %780
        %vm782 = vcmp.lt.s32.totalorder %v297, 112
        %v783 = vsel %vm782, %v779, %v781
        %v784 = vsel %vm782, %v781, %v779
        %v785 = vsel %vm282, 1, 0
        %v786 = vperm.slane %v785, 0
        %v787 = vperm.slane %v785, 1
        %vm788 = vcmp.eq.s32.totalorder %v786, 1
        %vm789 = vcmp.eq.s32.totalorder %v787, 1
        %v790 = vsel %vm788, %v783, 0.0
        %v791 = vsel %vm789, %v784, 0.0
        %v793 = vsel %vm329, %v772, 0
        %v796 = vsel %vm333, %v790, 0
        %v799 = vsel %vm333, %v791, 0
        %801 = vmatpush.msra.mxu0 0.0
        %802 = vmatpush.msra.mxu0 0.0
        %803 = vmatpush.msra.mxu0 0.0
        %804 = vmatpush.msra.mxu0 0.0
        %805 = vmatpush.msra.mxu0 0.0
        %806 = vmatpush.msra.mxu0 0.0
        %807 = vmatpush.msra.mxu0 0.0
        %808 = vmatpush.msra.mxu0 0.0
        %809 = vmatpush.msra.mxu0 0.0
        %810 = vmatpush.msra.mxu0 0.0
        %811 = vmatpush.msra.mxu0 0.0
        %812 = vmatpush.msra.mxu0 0.0
        %813 = vmatpush.msra.mxu0 0.0
        %814 = vmatpush.msra.mxu0 0.0
        %815 = vmatpush.msra.mxu0 0.0
        %816 = vmatpush.msra.mxu0 %v796
        %817 = vmatmul.f32.gmra.mxu0 %v793
        %v818 = vpop.f32.mrf.mxu0
        %v819 = vadd.f32 0.0, %v818
        %820 = vdwg.mxu0
        %821 = vmatpush.msra.mxu0 0.0
        %822 = vmatpush.msra.mxu0 0.0
        %823 = vmatpush.msra.mxu0 0.0
        %824 = vmatpush.msra.mxu0 0.0
        %825 = vmatpush.msra.mxu0 0.0
        %826 = vmatpush.msra.mxu0 0.0
        %827 = vmatpush.msra.mxu0 0.0
        %828 = vmatpush.msra.mxu0 0.0
        %829 = vmatpush.msra.mxu0 0.0
        %830 = vmatpush.msra.mxu0 0.0
        %831 = vmatpush.msra.mxu0 0.0
        %832 = vmatpush.msra.mxu0 0.0
        %833 = vmatpush.msra.mxu0 0.0
        %834 = vmatpush.msra.mxu0 0.0
        %835 = vmatpush.msra.mxu0 0.0
        %836 = vmatpush.msra.mxu0 %v799
        %837 = vmatmul.f32.gmra.mxu0 %v793
        %v838 = vpop.f32.mrf.mxu0
        %v839 = vadd.f32 0.0, %v838
        %840 = vdwg.mxu0
        %v841 = vadd.f32 %v769, %v819
        %v842 = vadd.f32 %v770, %v839
        %s843 = scalar_lea.vmem %s2, 32
        %v844 = vld [vmem:[%s843] sm:$0xf]
        %845 = vst [vmem:[#allocation1] ss:$2 sm:$0xff] %v250
        %v846 = vld.sshfl [vmem:[#allocation1] sm:$0xff pattern:$0x75316420]
        %v847 = vld.sshfl [vmem:[#allocation1 + $0x8] sm:$0xff pattern:$0x75316420]
        %850 = vrot.lane.b32.xlu0 %v846, 111
        %v851 = vpop.permute.xlu0 %850
        %852 = vrot.lane.b32.xlu0 %v847, 111
        %v853 = vpop.permute.xlu0 %852
        %vm854 = vcmp.lt.s32.totalorder %v297, 111
        %v855 = vsel %vm854, %v851, %v853
        %v856 = vsel %vm854, %v853, %v851
        %v857 = vsel %vm284, 1, 0
        %v858 = vperm.slane %v857, 0
        %v859 = vperm.slane %v857, 1
        %vm860 = vcmp.eq.s32.totalorder %v858, 1
        %vm861 = vcmp.eq.s32.totalorder %v859, 1
        %v862 = vsel %vm860, %v855, 0.0
        %v863 = vsel %vm861, %v856, 0.0
        %v865 = vsel %vm329, %v844, 0
        %v868 = vsel %vm333, %v862, 0
        %v871 = vsel %vm333, %v863, 0
        %873 = vmatpush.msra.mxu0 0.0
        %874 = vmatpush.msra.mxu0 0.0
        %875 = vmatpush.msra.mxu0 0.0
        %876 = vmatpush.msra.mxu0 0.0
        %877 = vmatpush.msra.mxu0 0.0
        %878 = vmatpush.msra.mxu0 0.0
        %879 = vmatpush.msra.mxu0 0.0
        %880 = vmatpush.msra.mxu0 0.0
        %881 = vmatpush.msra.mxu0 0.0
        %882 = vmatpush.msra.mxu0 0.0
        %883 = vmatpush.msra.mxu0 0.0
        %884 = vmatpush.msra.mxu0 0.0
        %885 = vmatpush.msra.mxu0 0.0
        %886 = vmatpush.msra.mxu0 0.0
        %887 = vmatpush.msra.mxu0 0.0
        %888 = vmatpush.msra.mxu0 %v868
        %889 = vmatmul.f32.gmra.mxu0 %v865
        %v890 = vpop.f32.mrf.mxu0
        %v891 = vadd.f32 0.0, %v890
        %892 = vdwg.mxu0
        %893 = vmatpush.msra.mxu0 0.0
        %894 = vmatpush.msra.mxu0 0.0
        %895 = vmatpush.msra.mxu0 0.0
        %896 = vmatpush.msra.mxu0 0.0
        %897 = vmatpush.msra.mxu0 0.0
        %898 = vmatpush.msra.mxu0 0.0
        %899 = vmatpush.msra.mxu0 0.0
        %900 = vmatpush.msra.mxu0 0.0
        %901 = vmatpush.msra.mxu0 0.0
        %902 = vmatpush.msra.mxu0 0.0
        %903 = vmatpush.msra.mxu0 0.0
        %904 = vmatpush.msra.mxu0 0.0
        %905 = vmatpush.msra.mxu0 0.0
        %906 = vmatpush.msra.mxu0 0.0
        %907 = vmatpush.msra.mxu0 0.0
        %908 = vmatpush.msra.mxu0 %v871
        %909 = vmatmul.f32.gmra.mxu0 %v865
        %v910 = vpop.f32.mrf.mxu0
        %v911 = vadd.f32 0.0, %v910
        %912 = vdwg.mxu0
        %v913 = vadd.f32 %v841, %v891
        %v914 = vadd.f32 %v842, %v911
        %v915 = vld [vmem:[%s3] sm:$0xf]
        %917 = vset.pattern.permute.xlu0 0
        %918 = vperm.xlu0 %917, %v915
        %v919 = vpop.permute.xlu0 %918
        %v921 = vadd.f32 %v913, %v919
        %v922 = vadd.f32 %v914, %v919
        %v923 = vmax.f32 %v921, 0.0
        %v924 = vmax.f32 %v922, 0.0
        %v925 = vld [vmem:[%s4] sm:$0xf]
        %926 = vrot.lane.b32.xlu0 %v923, 17
        %v927 = vpop.permute.xlu0 %926
        %928 = vrot.lane.b32.xlu0 %v924, 17
        %v929 = vpop.permute.xlu0 %928
        %v930 = vsel %vm298, %v927, %v929
        %v931 = vsel %vm298, %v929, %v927
        %v932 = vsel %vm304, %v931, 0.0
        %v933 = vsel %vm305, %v930, 0.0
        %s934 = scalar_lea.vmem %s4, 4
        %v935 = vld [vmem:[%s934] sm:$0xf]
        %936 = vrot.lane.b32.xlu0 %v923, 16
        %v937 = vpop.permute.xlu0 %936
        %938 = vrot.lane.b32.xlu0 %v924, 16
        %v939 = vpop.permute.xlu0 %938
        %v940 = vsel %vm319, %v937, %v939
        %v941 = vsel %vm319, %v939, %v937
        %v942 = vsel %vm325, %v941, 0.0
        %v943 = vsel %vm326, %v940, 0.0
        %v945 = vsel %vm329, %v935, 0
        %v948 = vsel %vm333, %v942, 0
        %v951 = vsel %vm333, %v943, 0
        %953 = vmatpush.msra.mxu0 0.0
        %954 = vmatpush.msra.mxu0 0.0
        %955 = vmatpush.msra.mxu0 0.0
        %956 = vmatpush.msra.mxu0 0.0
        %957 = vmatpush.msra.mxu0 0.0
        %958 = vmatpush.msra.mxu0 0.0
        %959 = vmatpush.msra.mxu0 0.0
        %960 = vmatpush.msra.mxu0 0.0
        %961 = vmatpush.msra.mxu0 0.0
        %962 = vmatpush.msra.mxu0 0.0
        %963 = vmatpush.msra.mxu0 0.0
        %964 = vmatpush.msra.mxu0 0.0
        %965 = vmatpush.msra.mxu0 0.0
        %966 = vmatpush.msra.mxu0 0.0
        %967 = vmatpush.msra.mxu0 0.0
        %968 = vmatpush.msra.mxu0 %v948
        %969 = vmatmul.f32.gmra.mxu0 %v945
        %v970 = vpop.f32.mrf.mxu0
        %v971 = vadd.f32 0.0, %v970
        %972 = vdwg.mxu0
        %973 = vmatpush.msra.mxu0 0.0
        %974 = vmatpush.msra.mxu0 0.0
        %975 = vmatpush.msra.mxu0 0.0
        %976 = vmatpush.msra.mxu0 0.0
        %977 = vmatpush.msra.mxu0 0.0
        %978 = vmatpush.msra.mxu0 0.0
        %979 = vmatpush.msra.mxu0 0.0
        %980 = vmatpush.msra.mxu0 0.0
        %981 = vmatpush.msra.mxu0 0.0
        %982 = vmatpush.msra.mxu0 0.0
        %983 = vmatpush.msra.mxu0 0.0
        %984 = vmatpush.msra.mxu0 0.0
        %985 = vmatpush.msra.mxu0 0.0
        %986 = vmatpush.msra.mxu0 0.0
        %987 = vmatpush.msra.mxu0 0.0
        %988 = vmatpush.msra.mxu0 %v951
        %989 = vmatmul.f32.gmra.mxu0 %v945
        %v990 = vpop.f32.mrf.mxu0
        %v991 = vadd.f32 0.0, %v990
        %992 = vdwg.mxu0
        %v994 = vsel %vm329, %v925, 0
        %v997 = vsel %vm333, %v932, 0
        %v1000 = vsel %vm333, %v933, 0
        %1002 = vmatpush.msra.mxu0 0.0
        %1003 = vmatpush.msra.mxu0 0.0
        %1004 = vmatpush.msra.mxu0 0.0
        %1005 = vmatpush.msra.mxu0 0.0
        %1006 = vmatpush.msra.mxu0 0.0
        %1007 = vmatpush.msra.mxu0 0.0
        %1008 = vmatpush.msra.mxu0 0.0
        %1009 = vmatpush.msra.mxu0 0.0
        %1010 = vmatpush.msra.mxu0 0.0
        %1011 = vmatpush.msra.mxu0 0.0
        %1012 = vmatpush.msra.mxu0 0.0
        %1013 = vmatpush.msra.mxu0 0.0
        %1014 = vmatpush.msra.mxu0 0.0
        %1015 = vmatpush.msra.mxu0 0.0
        %1016 = vmatpush.msra.mxu0 0.0
        %1017 = vmatpush.msra.mxu0 %v997
        %1018 = vmatmul.f32.gmra.mxu0 %v994
        %v1019 = vpop.f32.mrf.mxu0
        %v1020 = vadd.f32 %v971, %v1019
        %1021 = vdwg.mxu0
        %1022 = vmatpush.msra.mxu0 0.0
        %1023 = vmatpush.msra.mxu0 0.0
        %1024 = vmatpush.msra.mxu0 0.0
        %1025 = vmatpush.msra.mxu0 0.0
        %1026 = vmatpush.msra.mxu0 0.0
        %1027 = vmatpush.msra.mxu0 0.0
        %1028 = vmatpush.msra.mxu0 0.0
        %1029 = vmatpush.msra.mxu0 0.0
        %1030 = vmatpush.msra.mxu0 0.0
        %1031 = vmatpush.msra.mxu0 0.0
        %1032 = vmatpush.msra.mxu0 0.0
        %1033 = vmatpush.msra.mxu0 0.0
        %1034 = vmatpush.msra.mxu0 0.0
        %1035 = vmatpush.msra.mxu0 0.0
        %1036 = vmatpush.msra.mxu0 0.0
        %1037 = vmatpush.msra.mxu0 %v1000
        %1038 = vmatmul.f32.gmra.mxu0 %v994
        %v1039 = vpop.f32.mrf.mxu0
        %v1040 = vadd.f32 %v991, %v1039
        %1041 = vdwg.mxu0
        %s1042 = scalar_lea.vmem %s4, 8
        %v1043 = vld [vmem:[%s1042] sm:$0xf]
        %1044 = vrot.lane.b32.xlu0 %v923, 15
        %v1045 = vpop.permute.xlu0 %1044
        %1046 = vrot.lane.b32.xlu0 %v924, 15
        %v1047 = vpop.permute.xlu0 %1046
        %v1048 = vsel %vm440, %v1045, %v1047
        %v1049 = vsel %vm440, %v1047, %v1045
        %v1050 = vsel %vm446, %v1049, 0.0
        %v1051 = vsel %vm447, %v1048, 0.0
        %v1053 = vsel %vm329, %v1043, 0
        %v1056 = vsel %vm333, %v1050, 0
        %v1059 = vsel %vm333, %v1051, 0
        %1061 = vmatpush.msra.mxu0 0.0
        %1062 = vmatpush.msra.mxu0 0.0
        %1063 = vmatpush.msra.mxu0 0.0
        %1064 = vmatpush.msra.mxu0 0.0
        %1065 = vmatpush.msra.mxu0 0.0
        %1066 = vmatpush.msra.mxu0 0.0
        %1067 = vmatpush.msra.mxu0 0.0
        %1068 = vmatpush.msra.mxu0 0.0
        %1069 = vmatpush.msra.mxu0 0.0
        %1070 = vmatpush.msra.mxu0 0.0
        %1071 = vmatpush.msra.mxu0 0.0
        %1072 = vmatpush.msra.mxu0 0.0
        %1073 = vmatpush.msra.mxu0 0.0
        %1074 = vmatpush.msra.mxu0 0.0
        %1075 = vmatpush.msra.mxu0 0.0
        %1076 = vmatpush.msra.mxu0 %v1056
        %1077 = vmatmul.f32.gmra.mxu0 %v1053
        %v1078 = vpop.f32.mrf.mxu0
        %v1079 = vadd.f32 0.0, %v1078
        %1080 = vdwg.mxu0
        %1081 = vmatpush.msra.mxu0 0.0
        %1082 = vmatpush.msra.mxu0 0.0
        %1083 = vmatpush.msra.mxu0 0.0
        %1084 = vmatpush.msra.mxu0 0.0
        %1085 = vmatpush.msra.mxu0 0.0
        %1086 = vmatpush.msra.mxu0 0.0
        %1087 = vmatpush.msra.mxu0 0.0
        %1088 = vmatpush.msra.mxu0 0.0
        %1089 = vmatpush.msra.mxu0 0.0
        %1090 = vmatpush.msra.mxu0 0.0
        %1091 = vmatpush.msra.mxu0 0.0
        %1092 = vmatpush.msra.mxu0 0.0
        %1093 = vmatpush.msra.mxu0 0.0
        %1094 = vmatpush.msra.mxu0 0.0
        %1095 = vmatpush.msra.mxu0 0.0
        %1096 = vmatpush.msra.mxu0 %v1059
        %1097 = vmatmul.f32.gmra.mxu0 %v1053
        %v1098 = vpop.f32.mrf.mxu0
        %v1099 = vadd.f32 0.0, %v1098
        %1100 = vdwg.mxu0
        %v1101 = vadd.f32 %v1020, %v1079
        %v1102 = vadd.f32 %v1040, %v1099
        %s1103 = scalar_lea.vmem %s4, 12
        %v1104 = vld [vmem:[%s1103] sm:$0xf]
        %1105 = vrot.lane.b32.xlu0 %v923, 1
        %v1106 = vpop.permute.xlu0 %1105
        %1107 = vrot.lane.b32.xlu0 %v924, 1
        %v1108 = vpop.permute.xlu0 %1107
        %v1109 = vsel %vm512, %v1106, %v1108
        %v1110 = vsel %vm512, %v1108, %v1106
        %v1111 = vsel %vm518, %v1110, 0.0
        %v1112 = vsel %vm519, %v1109, 0.0
        %v1114 = vsel %vm329, %v1104, 0
        %v1117 = vsel %vm333, %v1111, 0
        %v1120 = vsel %vm333, %v1112, 0
        %1122 = vmatpush.msra.mxu0 0.0
        %1123 = vmatpush.msra.mxu0 0.0
        %1124 = vmatpush.msra.mxu0 0.0
        %1125 = vmatpush.msra.mxu0 0.0
        %1126 = vmatpush.msra.mxu0 0.0
        %1127 = vmatpush.msra.mxu0 0.0
        %1128 = vmatpush.msra.mxu0 0.0
        %1129 = vmatpush.msra.mxu0 0.0
        %1130 = vmatpush.msra.mxu0 0.0
        %1131 = vmatpush.msra.mxu0 0.0
        %1132 = vmatpush.msra.mxu0 0.0
        %1133 = vmatpush.msra.mxu0 0.0
        %1134 = vmatpush.msra.mxu0 0.0
        %1135 = vmatpush.msra.mxu0 0.0
        %1136 = vmatpush.msra.mxu0 0.0
        %1137 = vmatpush.msra.mxu0 %v1117
        %1138 = vmatmul.f32.gmra.mxu0 %v1114
        %v1139 = vpop.f32.mrf.mxu0
        %v1140 = vadd.f32 0.0, %v1139
        %1141 = vdwg.mxu0
        %1142 = vmatpush.msra.mxu0 0.0
        %1143 = vmatpush.msra.mxu0 0.0
        %1144 = vmatpush.msra.mxu0 0.0
        %1145 = vmatpush.msra.mxu0 0.0
        %1146 = vmatpush.msra.mxu0 0.0
        %1147 = vmatpush.msra.mxu0 0.0
        %1148 = vmatpush.msra.mxu0 0.0
        %1149 = vmatpush.msra.mxu0 0.0
        %1150 = vmatpush.msra.mxu0 0.0
        %1151 = vmatpush.msra.mxu0 0.0
        %1152 = vmatpush.msra.mxu0 0.0
        %1153 = vmatpush.msra.mxu0 0.0
        %1154 = vmatpush.msra.mxu0 0.0
        %1155 = vmatpush.msra.mxu0 0.0
        %1156 = vmatpush.msra.mxu0 0.0
        %1157 = vmatpush.msra.mxu0 %v1120
        %1158 = vmatmul.f32.gmra.mxu0 %v1114
        %v1159 = vpop.f32.mrf.mxu0
        %v1160 = vadd.f32 0.0, %v1159
        %1161 = vdwg.mxu0
        %v1162 = vadd.f32 %v1101, %v1140
        %v1163 = vadd.f32 %v1102, %v1160
        %s1164 = scalar_lea.vmem %s4, 16
        %v1165 = vld [vmem:[%s1164] sm:$0xf]
        %v1167 = vsel %vm329, %v1165, 0
        %v1170 = vsel %vm333, %v923, 0
        %v1173 = vsel %vm333, %v924, 0
        %1175 = vmatpush.msra.mxu0 0.0
        %1176 = vmatpush.msra.mxu0 0.0
        %1177 = vmatpush.msra.mxu0 0.0
        %1178 = vmatpush.msra.mxu0 0.0
        %1179 = vmatpush.msra.mxu0 0.0
        %1180 = vmatpush.msra.mxu0 0.0
        %1181 = vmatpush.msra.mxu0 0.0
        %1182 = vmatpush.msra.mxu0 0.0
        %1183 = vmatpush.msra.mxu0 0.0
        %1184 = vmatpush.msra.mxu0 0.0
        %1185 = vmatpush.msra.mxu0 0.0
        %1186 = vmatpush.msra.mxu0 0.0
        %1187 = vmatpush.msra.mxu0 0.0
        %1188 = vmatpush.msra.mxu0 0.0
        %1189 = vmatpush.msra.mxu0 0.0
        %1190 = vmatpush.msra.mxu0 %v1170
        %1191 = vmatmul.f32.gmra.mxu0 %v1167
        %v1192 = vpop.f32.mrf.mxu0
        %v1193 = vadd.f32 0.0, %v1192
        %1194 = vdwg.mxu0
        %1195 = vmatpush.msra.mxu0 0.0
        %1196 = vmatpush.msra.mxu0 0.0
        %1197 = vmatpush.msra.mxu0 0.0
        %1198 = vmatpush.msra.mxu0 0.0
        %1199 = vmatpush.msra.mxu0 0.0
        %1200 = vmatpush.msra.mxu0 0.0
        %1201 = vmatpush.msra.mxu0 0.0
        %1202 = vmatpush.msra.mxu0 0.0
        %1203 = vmatpush.msra.mxu0 0.0
        %1204 = vmatpush.msra.mxu0 0.0
        %1205 = vmatpush.msra.mxu0 0.0
        %1206 = vmatpush.msra.mxu0 0.0
        %1207 = vmatpush.msra.mxu0 0.0
        %1208 = vmatpush.msra.mxu0 0.0
        %1209 = vmatpush.msra.mxu0 0.0
        %1210 = vmatpush.msra.mxu0 %v1173
        %1211 = vmatmul.f32.gmra.mxu0 %v1167
        %v1212 = vpop.f32.mrf.mxu0
        %v1213 = vadd.f32 0.0, %v1212
        %1214 = vdwg.mxu0
        %v1215 = vadd.f32 %v1162, %v1193
        %v1216 = vadd.f32 %v1163, %v1213
        %s1217 = scalar_lea.vmem %s4, 20
        %v1218 = vld [vmem:[%s1217] sm:$0xf]
        %1219 = vrot.lane.b32.xlu0 %v923, 127
        %v1220 = vpop.permute.xlu0 %1219
        %1221 = vrot.lane.b32.xlu0 %v924, 127
        %v1222 = vpop.permute.xlu0 %1221
        %v1223 = vsel %vm638, %v1220, %v1222
        %v1224 = vsel %vm638, %v1222, %v1220
        %v1225 = vsel %vm644, %v1223, 0.0
        %v1226 = vsel %vm645, %v1224, 0.0
        %v1228 = vsel %vm329, %v1218, 0
        %v1231 = vsel %vm333, %v1225, 0
        %v1234 = vsel %vm333, %v1226, 0
        %1236 = vmatpush.msra.mxu0 0.0
        %1237 = vmatpush.msra.mxu0 0.0
        %1238 = vmatpush.msra.mxu0 0.0
        %1239 = vmatpush.msra.mxu0 0.0
        %1240 = vmatpush.msra.mxu0 0.0
        %1241 = vmatpush.msra.mxu0 0.0
        %1242 = vmatpush.msra.mxu0 0.0
        %1243 = vmatpush.msra.mxu0 0.0
        %1244 = vmatpush.msra.mxu0 0.0
        %1245 = vmatpush.msra.mxu0 0.0
        %1246 = vmatpush.msra.mxu0 0.0
        %1247 = vmatpush.msra.mxu0 0.0
        %1248 = vmatpush.msra.mxu0 0.0
        %1249 = vmatpush.msra.mxu0 0.0
        %1250 = vmatpush.msra.mxu0 0.0
        %1251 = vmatpush.msra.mxu0 %v1231
        %1252 = vmatmul.f32.gmra.mxu0 %v1228
        %v1253 = vpop.f32.mrf.mxu0
        %v1254 = vadd.f32 0.0, %v1253
        %1255 = vdwg.mxu0
        %1256 = vmatpush.msra.mxu0 0.0
        %1257 = vmatpush.msra.mxu0 0.0
        %1258 = vmatpush.msra.mxu0 0.0
        %1259 = vmatpush.msra.mxu0 0.0
        %1260 = vmatpush.msra.mxu0 0.0
        %1261 = vmatpush.msra.mxu0 0.0
        %1262 = vmatpush.msra.mxu0 0.0
        %1263 = vmatpush.msra.mxu0 0.0
        %1264 = vmatpush.msra.mxu0 0.0
        %1265 = vmatpush.msra.mxu0 0.0
        %1266 = vmatpush.msra.mxu0 0.0
        %1267 = vmatpush.msra.mxu0 0.0
        %1268 = vmatpush.msra.mxu0 0.0
        %1269 = vmatpush.msra.mxu0 0.0
        %1270 = vmatpush.msra.mxu0 0.0
        %1271 = vmatpush.msra.mxu0 %v1234
        %1272 = vmatmul.f32.gmra.mxu0 %v1228
        %v1273 = vpop.f32.mrf.mxu0
        %v1274 = vadd.f32 0.0, %v1273
        %1275 = vdwg.mxu0
        %v1276 = vadd.f32 %v1215, %v1254
        %v1277 = vadd.f32 %v1216, %v1274
        %s1278 = scalar_lea.vmem %s4, 24
        %v1279 = vld [vmem:[%s1278] sm:$0xf]
        %1280 = vrot.lane.b32.xlu0 %v923, 113
        %v1281 = vpop.permute.xlu0 %1280
        %1282 = vrot.lane.b32.xlu0 %v924, 113
        %v1283 = vpop.permute.xlu0 %1282
        %v1284 = vsel %vm710, %v1281, %v1283
        %v1285 = vsel %vm710, %v1283, %v1281
        %v1286 = vsel %vm716, %v1284, 0.0
        %v1287 = vsel %vm717, %v1285, 0.0
        %v1289 = vsel %vm329, %v1279, 0
        %v1292 = vsel %vm333, %v1286, 0
        %v1295 = vsel %vm333, %v1287, 0
        %1297 = vmatpush.msra.mxu0 0.0
        %1298 = vmatpush.msra.mxu0 0.0
        %1299 = vmatpush.msra.mxu0 0.0
        %1300 = vmatpush.msra.mxu0 0.0
        %1301 = vmatpush.msra.mxu0 0.0
        %1302 = vmatpush.msra.mxu0 0.0
        %1303 = vmatpush.msra.mxu0 0.0
        %1304 = vmatpush.msra.mxu0 0.0
        %1305 = vmatpush.msra.mxu0 0.0
        %1306 = vmatpush.msra.mxu0 0.0
        %1307 = vmatpush.msra.mxu0 0.0
        %1308 = vmatpush.msra.mxu0 0.0
        %1309 = vmatpush.msra.mxu0 0.0
        %1310 = vmatpush.msra.mxu0 0.0
        %1311 = vmatpush.msra.mxu0 0.0
        %1312 = vmatpush.msra.mxu0 %v1292
        %1313 = vmatmul.f32.gmra.mxu0 %v1289
        %v1314 = vpop.f32.mrf.mxu0
        %v1315 = vadd.f32 0.0, %v1314
        %1316 = vdwg.mxu0
        %1317 = vmatpush.msra.mxu0 0.0
        %1318 = vmatpush.msra.mxu0 0.0
        %1319 = vmatpush.msra.mxu0 0.0
        %1320 = vmatpush.msra.mxu0 0.0
        %1321 = vmatpush.msra.mxu0 0.0
        %1322 = vmatpush.msra.mxu0 0.0
        %1323 = vmatpush.msra.mxu0 0.0
        %1324 = vmatpush.msra.mxu0 0.0
        %1325 = vmatpush.msra.mxu0 0.0
        %1326 = vmatpush.msra.mxu0 0.0
        %1327 = vmatpush.msra.mxu0 0.0
        %1328 = vmatpush.msra.mxu0 0.0
        %1329 = vmatpush.msra.mxu0 0.0
        %1330 = vmatpush.msra.mxu0 0.0
        %1331 = vmatpush.msra.mxu0 0.0
        %1332 = vmatpush.msra.mxu0 %v1295
        %1333 = vmatmul.f32.gmra.mxu0 %v1289
        %v1334 = vpop.f32.mrf.mxu0
        %v1335 = vadd.f32 0.0, %v1334
        %1336 = vdwg.mxu0
        %v1337 = vadd.f32 %v1276, %v1315
        %v1338 = vadd.f32 %v1277, %v1335
        %s1339 = scalar_lea.vmem %s4, 28
        %v1340 = vld [vmem:[%s1339] sm:$0xf]
        %1341 = vrot.lane.b32.xlu0 %v923, 112
        %v1342 = vpop.permute.xlu0 %1341
        %1343 = vrot.lane.b32.xlu0 %v924, 112
        %v1344 = vpop.permute.xlu0 %1343
        %v1345 = vsel %vm782, %v1342, %v1344
        %v1346 = vsel %vm782, %v1344, %v1342
        %v1347 = vsel %vm788, %v1345, 0.0
        %v1348 = vsel %vm789, %v1346, 0.0
        %v1350 = vsel %vm329, %v1340, 0
        %v1353 = vsel %vm333, %v1347, 0
        %v1356 = vsel %vm333, %v1348, 0
        %1358 = vmatpush.msra.mxu0 0.0
        %1359 = vmatpush.msra.mxu0 0.0
        %1360 = vmatpush.msra.mxu0 0.0
        %1361 = vmatpush.msra.mxu0 0.0
        %1362 = vmatpush.msra.mxu0 0.0
        %1363 = vmatpush.msra.mxu0 0.0
        %1364 = vmatpush.msra.mxu0 0.0
        %1365 = vmatpush.msra.mxu0 0.0
        %1366 = vmatpush.msra.mxu0 0.0
        %1367 = vmatpush.msra.mxu0 0.0
        %1368 = vmatpush.msra.mxu0 0.0
        %1369 = vmatpush.msra.mxu0 0.0
        %1370 = vmatpush.msra.mxu0 0.0
        %1371 = vmatpush.msra.mxu0 0.0
        %1372 = vmatpush.msra.mxu0 0.0
        %1373 = vmatpush.msra.mxu0 %v1353
        %1374 = vmatmul.f32.gmra.mxu0 %v1350
        %v1375 = vpop.f32.mrf.mxu0
        %v1376 = vadd.f32 0.0, %v1375
        %1377 = vdwg.mxu0
        %1378 = vmatpush.msra.mxu0 0.0
        %1379 = vmatpush.msra.mxu0 0.0
        %1380 = vmatpush.msra.mxu0 0.0
        %1381 = vmatpush.msra.mxu0 0.0
        %1382 = vmatpush.msra.mxu0 0.0
        %1383 = vmatpush.msra.mxu0 0.0
        %1384 = vmatpush.msra.mxu0 0.0
        %1385 = vmatpush.msra.mxu0 0.0
        %1386 = vmatpush.msra.mxu0 0.0
        %1387 = vmatpush.msra.mxu0 0.0
        %1388 = vmatpush.msra.mxu0 0.0
        %1389 = vmatpush.msra.mxu0 0.0
        %1390 = vmatpush.msra.mxu0 0.0
        %1391 = vmatpush.msra.mxu0 0.0
        %1392 = vmatpush.msra.mxu0 0.0
        %1393 = vmatpush.msra.mxu0 %v1356
        %1394 = vmatmul.f32.gmra.mxu0 %v1350
        %v1395 = vpop.f32.mrf.mxu0
        %v1396 = vadd.f32 0.0, %v1395
        %1397 = vdwg.mxu0
        %v1398 = vadd.f32 %v1337, %v1376
        %v1399 = vadd.f32 %v1338, %v1396
        %s1400 = scalar_lea.vmem %s4, 32
        %v1401 = vld [vmem:[%s1400] sm:$0xf]
        %1402 = vrot.lane.b32.xlu0 %v923, 111
        %v1403 = vpop.permute.xlu0 %1402
        %1404 = vrot.lane.b32.xlu0 %v924, 111
        %v1405 = vpop.permute.xlu0 %1404
        %v1406 = vsel %vm854, %v1403, %v1405
        %v1407 = vsel %vm854, %v1405, %v1403
        %v1408 = vsel %vm860, %v1406, 0.0
        %v1409 = vsel %vm861, %v1407, 0.0
        %v1411 = vsel %vm329, %v1401, 0
        %v1414 = vsel %vm333, %v1408, 0
        %v1417 = vsel %vm333, %v1409, 0
        %1419 = vmatpush.msra.mxu0 0.0
        %1420 = vmatpush.msra.mxu0 0.0
        %1421 = vmatpush.msra.mxu0 0.0
        %1422 = vmatpush.msra.mxu0 0.0
        %1423 = vmatpush.msra.mxu0 0.0
        %1424 = vmatpush.msra.mxu0 0.0
        %1425 = vmatpush.msra.mxu0 0.0
        %1426 = vmatpush.msra.mxu0 0.0
        %1427 = vmatpush.msra.mxu0 0.0
        %1428 = vmatpush.msra.mxu0 0.0
        %1429 = vmatpush.msra.mxu0 0.0
        %1430 = vmatpush.msra.mxu0 0.0
        %1431 = vmatpush.msra.mxu0 0.0
        %1432 = vmatpush.msra.mxu0 0.0
        %1433 = vmatpush.msra.mxu0 0.0
        %1434 = vmatpush.msra.mxu0 %v1414
        %1435 = vmatmul.f32.gmra.mxu0 %v1411
        %v1436 = vpop.f32.mrf.mxu0
        %v1437 = vadd.f32 0.0, %v1436
        %1438 = vdwg.mxu0
        %1439 = vmatpush.msra.mxu0 0.0
        %1440 = vmatpush.msra.mxu0 0.0
        %1441 = vmatpush.msra.mxu0 0.0
        %1442 = vmatpush.msra.mxu0 0.0
        %1443 = vmatpush.msra.mxu0 0.0
        %1444 = vmatpush.msra.mxu0 0.0
        %1445 = vmatpush.msra.mxu0 0.0
        %1446 = vmatpush.msra.mxu0 0.0
        %1447 = vmatpush.msra.mxu0 0.0
        %1448 = vmatpush.msra.mxu0 0.0
        %1449 = vmatpush.msra.mxu0 0.0
        %1450 = vmatpush.msra.mxu0 0.0
        %1451 = vmatpush.msra.mxu0 0.0
        %1452 = vmatpush.msra.mxu0 0.0
        %1453 = vmatpush.msra.mxu0 0.0
        %1454 = vmatpush.msra.mxu0 %v1417
        %1455 = vmatmul.f32.gmra.mxu0 %v1411
        %v1456 = vpop.f32.mrf.mxu0
        %v1457 = vadd.f32 0.0, %v1456
        %1458 = vdwg.mxu0
        %v1459 = vadd.f32 %v1398, %v1437
        %v1460 = vadd.f32 %v1399, %v1457
        %v1461 = vld [vmem:[%s5] sm:$0xf]
        %1463 = vset.pattern.permute.xlu0 0
        %1464 = vperm.xlu0 %1463, %v1461
        %v1465 = vpop.permute.xlu0 %1464
        %v1467 = vadd.f32 %v1459, %v1465
        %v1468 = vadd.f32 %v1460, %v1465
        %1469 = vst [vmem:[#allocation1] ss:$2 sm:$0xff] %v250
        %v1470 = vld.sshfl [vmem:[#allocation1] sm:$0xff pattern:$0x75316420]
        %v1471 = vld.sshfl [vmem:[#allocation1 + $0x8] sm:$0xff pattern:$0x75316420]
        %v1474 = vadd.f32 %v1467, %v1470
        %v1475 = vadd.f32 %v1468, %v1471
        %v1478 = vrot.slane %v1475, 4
        %v1479 = vsel %vm333, %v1474, %v1478
        %1481 = vst [vmem:[%s244] sm:$0xff] %v1479
        %s1482 = sand.u32 %s159, 1
        %s1483 = scalar_lea.sflag [#allocation3], %s1482
        %s1484 = sand.u32 %s159, 1
        %s1485 = smul.addr %s1484, 8
        %s1486 = scalar_lea.vmem [#allocation2], %s1485
        // Predicated region
        $region45: #{tpu_custom_call.1} parent=43 // pred_check
          %p1487 = pneg %p169
        $region46: #{tpu_custom_call.1} parent=43 // pred_check_branch
          %1489 = sbr.rel (%p1487) target = $region48
        $region47: #{tpu_custom_call.1} parent=43 // pred_region
          %1491 = vsyncadd %s1483, 0
          %s1492 = smul.addr %s20, 2
          %s1493 = smul.addr %s1492, 4
          %s1494 = scalar_lea.hbm %s6, %s1493
          %s1496 = sshll.u32 %s1486, 4
          %s1497 = int_to_ptr.vmem [resolvable:$true] %s1496
          %s1498 = sshll.u32 %s1494, 4
          %s1499 = int_to_ptr.hbm [resolvable:$true] %s1498
          %1501 = dma.vmem_to_hbm [thread:$0]  %s1497, 128, %s1499, %s1483
        $region48: #{tpu_custom_call.1} parent=43 // pred_fallthru
          _
      $region44: #{tpu_custom_call.1} parent=5 // pred_fallthru
        _
      %p1502 = scmp.le.s32.totalorder 2, %s15
      // Predicated region
      $region49: #{tpu_custom_call.1} parent=5 // pred_check
        %p1503 = pneg %p1502
      $region50: #{tpu_custom_call.1} parent=5 // pred_check_branch
        %1505 = sbr.rel (%p1503) target = $region52
      $region51: #{tpu_custom_call.1} parent=5 // pred_region
        %s1506 = ssub.s32 %s15, 2
        // Predicated region
        $region53: #{tpu_custom_call.1} parent=51 // pred_check
          %p1507 = pneg %p175
        $region54: #{tpu_custom_call.1} parent=51 // pred_check_branch
          %1509 = sbr.rel (%p1507) target = $region56
        $region55: #{tpu_custom_call.1} parent=51 // pred_region
          %s1510 = sand.u32 %s160, 1
          %s1511 = scalar_lea.sflag [#allocation3], %s1510
          %s1512 = sand.u32 %s160, 1
          %s1513 = smul.addr %s1512, 8
          %s1514 = scalar_lea.vmem [#allocation2], %s1513
          %1516 = dma.done %s1511, 128
        $region56: #{tpu_custom_call.1} parent=51 // pred_fallthru
          _
      $region52: #{tpu_custom_call.1} parent=5 // pred_fallthru
        _
    $region6: #{tpu_custom_call.1} parent=1 // loop_footer
      %s19 = sadd.s32 1, %s15
    $region7: #{tpu_custom_call.1} parent=1 // loop_footer_branch
      %14 = sbr.rel target = $region3
    $region8: #{tpu_custom_call.1} parent=1 // loop_exit
      _
    %1517 = vsyncpa [#allocation3], 1
    %s1518 = scalar_lea.sflag [#allocation3], 1
    %1519 = vsyncpa %s1518, 1

</llo_original>
